<compile_context>
chip_gen: v6e
topology: v6e:2x2x1
jax: 0.10.0
libtpu: 0.0.40
codegen_flags: <defaults>
</compile_context>

<pallas_src>
import functools

import numpy as np

import jax
import jax.numpy as jnp
from jax.experimental import pallas as pl
from jax.experimental.pallas import tpu as pltpu


def _wq_kernel(x_ref, qw_ref, sc_ref, z_ref, b_ref, o_ref, w_scratch, *acc_scratch,
               group_size, groups_per_block, w_bit, fused):
    """One grid step = (M tile, N tile, one K block of `groups_per_block` quantization groups).

    x_ref     : (TM, KB)              bfloat16   activations for this K block
    qw_ref    : (KB//8, TN)           int32      K-packed 4-bit weights (lane-dense)
    sc_ref    : (n_groups, TN)        float32    all scales for this N tile (resident)
    z_ref     : (n_groups, TN)        float32    all zero points for this N tile (resident)
    b_ref     : (1, TN)               float32    bias slice (resident)
    o_ref     : (TM, TN)              out dtype
    w_scratch : (KB, TN)              bfloat16   unpacked (and, if fused, dequantized) weights
    acc_scratch (optional): (TM, TN)  float32    accumulator (only if out dtype != f32)
    """
    acc_ref = acc_scratch[0] if acc_scratch else o_ref
    kb = pl.program_id(2)
    vals = 32 // w_bit                      # 8 nibbles per int32
    g8 = group_size // vals
    mask = (1 << w_bit) - 1
    G = groups_per_block

    if fused:
        # Prefill path: dequantize all G groups of this K block into bf16 scratch, then one
        # (TM, KB) @ (KB, TN) MXU matmul with f32 accumulation.
        for gl in range(G):
            grow = kb * G + gl
            sc = sc_ref[pl.ds(grow, 1), :].astype(jnp.bfloat16)     # (1, TN)
            z = z_ref[pl.ds(grow, 1), :].astype(jnp.bfloat16)       # (1, TN)
            qw_g = qw_ref[gl * g8:(gl + 1) * g8, :]                  # (g8, TN) int32
            base = gl * group_size
            for j in range(vals):
                nib = ((qw_g >> (w_bit * j)) & mask).astype(jnp.bfloat16)
                w_scratch[base + j * g8:base + (j + 1) * g8, :] = (nib - z) * sc

        @pl.when(kb == 0)
        def _():
            acc_ref[...] = jnp.dot(x_ref[...], w_scratch[...],
                                   preferred_element_type=jnp.float32)

        @pl.when(kb != 0)
        def _():
            acc_ref[...] += jnp.dot(x_ref[...], w_scratch[...],
                                    preferred_element_type=jnp.float32)
    else:
        # Decode path (tiny TM): raw-nibble matmul per group + hoisted zero/scale correction,
        # accumulated locally over the block's groups, then a single acc update.
        x = x_ref[...]
        upd = None
        for gl in range(G):
            grow = kb * G + gl
            qw_g = qw_ref[gl * g8:(gl + 1) * g8, :]
            base = gl * group_size
            for j in range(vals):
                w_scratch[base + j * g8:base + (j + 1) * g8, :] = (
                    (qw_g >> (w_bit * j)) & mask).astype(jnp.bfloat16)
            xg = x[:, base:base + group_size]
            partial = jnp.dot(xg, w_scratch[base:base + group_size, :],
                              preferred_element_type=jnp.float32)        # (TM, TN)
            sc = sc_ref[pl.ds(grow, 1), :]                                # (1, TN) f32
            zs = z_ref[pl.ds(grow, 1), :] * sc                            # (1, TN) f32
            rowsum = jnp.sum(xg.astype(jnp.float32), axis=1, keepdims=True)   # (TM, 1)
            contrib = partial * sc - rowsum * zs
            upd = contrib if upd is None else upd + contrib

        @pl.when(kb == 0)
        def _():
            acc_ref[...] = upd

        @pl.when(kb != 0)
        def _():
            acc_ref[...] += upd

    @pl.when(kb == pl.num_programs(2) - 1)
    def _():
        o_ref[...] = (acc_ref[...] + b_ref[...]).astype(o_ref.dtype)


def pack_int4_cols(values, w_bit=4):
    """Pack (..., N) 4-bit ints -> (..., N//8) int32 (the module's buffer format).
    Nibble j of packed word c holds the value of original column c*8 + j."""
    vals = 32 // w_bit
    *lead, n = values.shape
    v = values.reshape(*lead, n // vals, vals).astype(jnp.int32)
    packed = jnp.zeros((*lead, n // vals), jnp.int32)
    for j in range(vals):
        packed = packed | (v[..., j] << (w_bit * j))
    return packed


def make_q_matrix(qweight, qzeros, scales, *, w_bit=4, group_size=128):
    """post_init analogue of exlv2_ext.make_q_matrix.

    Takes the module's registered buffers
        qweight (in_features, out_features//8) int32
        qzeros  (in_features//group_size, out_features//8) int32
        scales  (in_features//group_size, out_features)
    and returns TPU-friendly tensors:
        q_kpacked (in_features//8, out_features) int32   -- 4-bit weights packed along K,
                    nibble j of row g*g8 + r holds W[g*group_size + j*g8 + r, :]
        scales_f32, zeros_f32 (n_groups, out_features) float32
    """
    vals = 32 // w_bit
    mask = (1 << w_bit) - 1
    k, n8 = qweight.shape
    n = n8 * vals
    if group_size == -1:
        group_size = k
    n_groups = k // group_size
    g8 = group_size // vals

    shifts = jnp.arange(vals, dtype=jnp.int32) * w_bit
    w = ((qweight[:, :, None] >> shifts[None, None, :]) & mask).reshape(k, n)        # (K, N)
    z = ((qzeros[:, :, None] >> shifts[None, None, :]) & mask).reshape(n_groups, n)  # (G, N)

    # Repack along K (lane-dense last dim), in the order the kernel's scratch fill expects.
    wg = w.reshape(n_groups, vals, g8, n)          # wg[g, j, r, :] = w[g*group_size + j*g8 + r, :]
    q_kpacked = jnp.zeros((n_groups, g8, n), jnp.int32)
    for j in range(vals):
        q_kpacked = q_kpacked | (wg[:, j] << (w_bit * j))
    q_kpacked = q_kpacked.reshape(k // vals, n)

    return q_kpacked, scales.astype(jnp.float32), z.astype(jnp.float32)


def _round_up(v, mult):
    return ((v + mult - 1) // mult) * mult


def _pick_tile_n(out_features, target, min_blocks):
    """Largest lane-dense (multiple of 128) divisor of out_features that is <= target and
    leaves at least `min_blocks` N blocks; falls back to the full dim / 128."""
    if out_features % 128 != 0:
        return out_features                         # full-dim block is always legal
    best = None
    cand = 128
    while cand <= min(out_features, target):
        if out_features % cand == 0 and out_features // cand >= min_blocks:
            best = cand
        cand += 128
    return best if best is not None else 128


def _pick_groups_per_block(n_groups, group_size, target_kblock):
    """Largest divisor of n_groups whose K extent fits target_kblock."""
    g = 1
    for cand in range(1, n_groups + 1):
        if n_groups % cand == 0 and cand * group_size <= target_kblock:
            g = cand
    return g


def wqlinear_exllamav2_forward(x, q_kpacked, scales_f32, zeros_f32, bias,
                               *, w_bit=4, group_size=128, tn=None, tm=None,
                               target_tn=1024, target_kblock=512):
    """Forward pass of WQLinear_ExllamaV2 using the prepared (make_q_matrix) tensors."""
    assert w_bit == 4, "Only 4-bit is supported (matches the PyTorch module)."
    vals = 32 // w_bit

    k8, out_features = q_kpacked.shape
    in_features = k8 * vals
    if group_size == -1:
        group_size = in_features
    assert in_features % group_size == 0
    n_groups = in_features // group_size
    assert x.shape[-1] == in_features
    assert scales_f32.shape == (n_groups, out_features)
    assert zeros_f32.shape == (n_groups, out_features)

    input_dtype = x.dtype
    out_shape = x.shape[:-1] + (out_features,)

    x2 = x.reshape(-1, in_features)
    m = x2.shape[0]

    # M tiling (bf16 sublane-tile aligned).
    if tm is None:
        tm = 512 if m >= 512 else max(16, _round_up(m, 16))
    mp = _round_up(m, tm)
    n_m_blocks = mp // tm

    # N tiling: lane-dense, large tiles; keep >= 2 "parallel" N blocks when M is a single
    # tile so both v7x TensorCores get work.
    if tn is None:
        min_nb = 2 if (n_m_blocks == 1 and out_features >= 256) else 1
        tn = _pick_tile_n(out_features, target_tn, min_nb)
    assert out_features % tn == 0
    assert tn % 128 == 0 or tn == out_features

    # K blocking: multiple quantization groups per grid step.
    gpb = _pick_groups_per_block(n_groups, group_size, target_kblock)
    kb_elems = gpb * group_size
    n_kblocks = n_groups // gpb
    assert kb_elems % 128 == 0 or kb_elems == in_features, \
        "K block must be lane-dense (multiple of 128) or the full reduction dim"

    if mp != m:
        x2 = jnp.pad(x2, ((0, mp - m), (0, 0)))
    x2 = x2.astype(jnp.bfloat16)   # bf16 MXU operands; accumulation stays f32

    if bias is None:
        bias2 = jnp.zeros((1, out_features), jnp.float32)
    else:
        bias2 = bias.reshape(1, out_features).astype(jnp.float32)

    out_dtype = input_dtype
    fused = tm >= 64                               # prefill: fused bf16 dequant; decode: hoisted
    use_acc_scratch = (out_dtype != jnp.float32)   # f32 outputs accumulate directly in o_ref
    scratch_shapes = [pltpu.VMEM((kb_elems, tn), jnp.bfloat16)]
    if use_acc_scratch:
        scratch_shapes.append(pltpu.VMEM((tm, tn), jnp.float32))

    kernel = functools.partial(_wq_kernel, group_size=group_size,
                               groups_per_block=gpb, w_bit=w_bit, fused=fused)

    # VMEM budget: double-buffered pipeline blocks + scratch, clamped to <= 48 MiB (v7x-safe).
    out_itemsize = np.dtype(out_dtype).itemsize
    vmem_est = (2 * (tm * kb_elems * 2                    # x block (bf16)
                     + (kb_elems // vals) * tn * 4        # qweight block (int32)
                     + 2 * n_groups * tn * 4              # resident scales + zeros (f32)
                     + tn * 4                             # bias
                     + tm * tn * out_itemsize)            # output block
                + kb_elems * tn * 2                       # w_scratch (bf16)
                + (tm * tn * 4 if use_acc_scratch else 0))
    vmem_limit = int(min(48 * 2**20, max(32 * 2**20, int(vmem_est * 1.5))))

    out = pl.pallas_call(
        kernel,
        out_shape=jax.ShapeDtypeStruct((mp, out_features), out_dtype),
        grid_spec=pltpu.PrefetchScalarGridSpec(
            num_scalar_prefetch=0,
            grid=(n_m_blocks, out_features // tn, n_kblocks),   # reduction (K blocks) last
            in_specs=[
                pl.BlockSpec((tm, kb_elems), lambda i, n, kb: (i, kb)),        # x K-slab
                pl.BlockSpec((kb_elems // vals, tn), lambda i, n, kb: (kb, n)),  # packed weights
                pl.BlockSpec((n_groups, tn), lambda i, n, kb: (0, n)),         # scales (resident)
                pl.BlockSpec((n_groups, tn), lambda i, n, kb: (0, n)),         # zeros (resident)
                pl.BlockSpec((1, tn), lambda i, n, kb: (0, n)),                # bias (resident)
            ],
            out_specs=pl.BlockSpec((tm, tn), lambda i, n, kb: (i, n)),
            scratch_shapes=scratch_shapes,
        ),
        compiler_params=pltpu.CompilerParams(
            dimension_semantics=("parallel", "parallel", "arbitrary"),
            vmem_limit_bytes=vmem_limit,
        ),
    )(x2, q_kpacked, scales_f32, zeros_f32, bias2)

    out = out[:m]
    return out.reshape(out_shape).astype(input_dtype)


if __name__ == "__main__":
    # Small, deterministic synthetic problem.
    w_bit = 4
    in_features = 256
    out_features = 512
    group_size = 128
    n_groups = in_features // group_size

    key = jax.random.PRNGKey(0)
    k1, k2, k3, k4, k5, k6 = jax.random.split(key, 6)

    # Unpacked 4-bit weight / zero values (0..15), packed into int32 buffers with the same
    # shapes as the PyTorch module's registered buffers.
    w_int = jax.random.randint(k1, (in_features, out_features), 0, 16, dtype=jnp.int32)
    z_int = jax.random.randint(k2, (n_groups, out_features), 0, 16, dtype=jnp.int32)
    qweight = pack_int4_cols(w_int, w_bit)    # (in_features, out_features//8) int32
    qzeros = pack_int4_cols(z_int, w_bit)     # (n_groups,  out_features//8) int32
    scales = jax.random.uniform(k3, (n_groups, out_features), jnp.float32, 0.005, 0.02)
    bias = jax.random.normal(k4, (out_features,), jnp.float32) * 0.1

    # post_init analogue: repack weights once, outside the hot path.
    q_kpacked, scales_f32, zeros_f32 = make_q_matrix(
        qweight, qzeros, scales, w_bit=w_bit, group_size=group_size)

    # Pure-JAX reference: explicit dequant + f32 matmul.
    w_deq = (w_int - jnp.repeat(z_int, group_size, axis=0)).astype(jnp.float32) \
            * jnp.repeat(scales, group_size, axis=0)

    def reference(x):
        y = x.reshape(-1, in_features).astype(jnp.float32) @ w_deq + bias
        return y.reshape(x.shape[:-1] + (out_features,)).astype(x.dtype)

    cases = (
        ("decode", (2, 4, in_features), k5),    # M = 8   -> hoisted zero/scale correction path
        ("prefill", (2, 64, in_features), k6),  # M = 128 -> fused bf16 dequant path
    )
    for name, shape, kx in cases:
        x = jax.random.normal(kx, shape, jnp.float32)
        out = wqlinear_exllamav2_forward(x, q_kpacked, scales_f32, zeros_f32, bias,
                                         w_bit=w_bit, group_size=group_size)
        out = jax.block_until_ready(out)
        ref = reference(x)
        assert out.shape == shape[:-1] + (out_features,)
        assert out.dtype == x.dtype
        max_err = jnp.max(jnp.abs(out - ref))
        # bf16 MXU operands (vs. the module's fp16 GPU path) -> relaxed tolerance.
        assert jnp.allclose(out, ref, rtol=5e-2, atol=5e-2), \
            f"{name}: mismatch vs reference (max err {max_err})"

    print("KERNEL_OK")
</pallas_src>

<mosaic_0001>
module attributes {stable_mosaic.version = 11 : i64} {
  func.func @_wq_kernel(%arg0: i32, %arg1: i32, %arg2: i32, %arg3: memref<16x256xbf16, #tpu.memory_space<vmem>>, %arg4: memref<32x256xi32, #tpu.memory_space<vmem>>, %arg5: memref<2x256xf32, #tpu.memory_space<vmem>>, %arg6: memref<2x256xf32, #tpu.memory_space<vmem>>, %arg7: memref<1x256xf32, #tpu.memory_space<vmem>>, %arg8: memref<16x256xf32, #tpu.memory_space<vmem>>, %arg9: memref<256x256xbf16, #tpu.memory_space<vmem>>) attributes {dimension_semantics = [#tpu.dimension_semantics<parallel>, #tpu.dimension_semantics<parallel>, #tpu.dimension_semantics<arbitrary>], iteration_bounds = array<i64: 1, 2, 1>, scalar_prefetch = 0 : i64, scratch_operands = 1 : i64, tpu.core_type = #tpu.core_type<tc>, window_params = [{transform_indices = @transform_0, window_bounds = array<i64: 16, 256>}, {transform_indices = @transform_1, window_bounds = array<i64: 32, 256>}, {transform_indices = @transform_2, window_bounds = array<i64: 2, 256>}, {transform_indices = @transform_3, window_bounds = array<i64: 2, 256>}, {transform_indices = @transform_4, window_bounds = array<i64: 1, 256>}, {transform_indices = @transform_5, window_bounds = array<i64: 16, 256>}]} {
    %c0 = arith.constant 0 : index
    %c0_0 = arith.constant 0 : index
    %0 = vector.load %arg3[%c0, %c0_0] : memref<16x256xbf16, #tpu.memory_space<vmem>>, vector<16x256xbf16>
    %c2_i32 = arith.constant 2 : i32
    %1 = arith.muli %arg2, %c2_i32 : i32
    %c0_i32 = arith.constant 0 : i32
    %2 = arith.addi %1, %c0_i32 : i32
    %c0_1 = arith.constant 0 : index
    %c0_2 = arith.constant 0 : index
    %3 = vector.load %arg4[%c0_1, %c0_2] : memref<32x256xi32, #tpu.memory_space<vmem>>, vector<16x256xi32>
    %c0_i32_3 = arith.constant 0 : i32
    %4 = vector.broadcast %c0_i32_3 : i32 to vector<16x256xi32>
    %5 = arith.shrsi %3, %4 : vector<16x256xi32>
    %c15_i32 = arith.constant 15 : i32
    %6 = vector.broadcast %c15_i32 : i32 to vector<16x256xi32>
    %7 = arith.andi %5, %6 : vector<16x256xi32>
    %8 = arith.sitofp %7 : vector<16x256xi32> to vector<16x256xbf16>
    %c0_4 = arith.constant 0 : index
    %c0_5 = arith.constant 0 : index
    %9 = vector.load %arg9[%c0_4, %c0_5] : memref<256x256xbf16, #tpu.memory_space<vmem>>, vector<16x256xbf16>
    tpu.vector_store %arg9[%c0_4, %c0_5], %8 {strides = array<i32>} : memref<256x256xbf16, #tpu.memory_space<vmem>>, vector<16x256xbf16>,
    %c4_i32 = arith.constant 4 : i32
    %10 = vector.broadcast %c4_i32 : i32 to vector<16x256xi32>
    %11 = arith.shrsi %3, %10 : vector<16x256xi32>
    %c15_i32_6 = arith.constant 15 : i32
    %12 = vector.broadcast %c15_i32_6 : i32 to vector<16x256xi32>
    %13 = arith.andi %11, %12 : vector<16x256xi32>
    %14 = arith.sitofp %13 : vector<16x256xi32> to vector<16x256xbf16>
    %c16 = arith.constant 16 : index
    %c0_7 = arith.constant 0 : index
    %15 = vector.load %arg9[%c16, %c0_7] : memref<256x256xbf16, #tpu.memory_space<vmem>>, vector<16x256xbf16>
    tpu.vector_store %arg9[%c16, %c0_7], %14 {strides = array<i32>} : memref<256x256xbf16, #tpu.memory_space<vmem>>, vector<16x256xbf16>,
    %c8_i32 = arith.constant 8 : i32
    %16 = vector.broadcast %c8_i32 : i32 to vector<16x256xi32>
    %17 = arith.shrsi %3, %16 : vector<16x256xi32>
    %c15_i32_8 = arith.constant 15 : i32
    %18 = vector.broadcast %c15_i32_8 : i32 to vector<16x256xi32>
    %19 = arith.andi %17, %18 : vector<16x256xi32>
    %20 = arith.sitofp %19 : vector<16x256xi32> to vector<16x256xbf16>
    %c32 = arith.constant 32 : index
    %c0_9 = arith.constant 0 : index
    %21 = vector.load %arg9[%c32, %c0_9] : memref<256x256xbf16, #tpu.memory_space<vmem>>, vector<16x256xbf16>
    tpu.vector_store %arg9[%c32, %c0_9], %20 {strides = array<i32>} : memref<256x256xbf16, #tpu.memory_space<vmem>>, vector<16x256xbf16>,
    %c12_i32 = arith.constant 12 : i32
    %22 = vector.broadcast %c12_i32 : i32 to vector<16x256xi32>
    %23 = arith.shrsi %3, %22 : vector<16x256xi32>
    %c15_i32_10 = arith.constant 15 : i32
    %24 = vector.broadcast %c15_i32_10 : i32 to vector<16x256xi32>
    %25 = arith.andi %23, %24 : vector<16x256xi32>
    %26 = arith.sitofp %25 : vector<16x256xi32> to vector<16x256xbf16>
    %c48 = arith.constant 48 : index
    %c0_11 = arith.constant 0 : index
    %27 = vector.load %arg9[%c48, %c0_11] : memref<256x256xbf16, #tpu.memory_space<vmem>>, vector<16x256xbf16>
    tpu.vector_store %arg9[%c48, %c0_11], %26 {strides = array<i32>} : memref<256x256xbf16, #tpu.memory_space<vmem>>, vector<16x256xbf16>,
    %c16_i32 = arith.constant 16 : i32
    %28 = vector.broadcast %c16_i32 : i32 to vector<16x256xi32>
    %29 = arith.shrsi %3, %28 : vector<16x256xi32>
    %c15_i32_12 = arith.constant 15 : i32
    %30 = vector.broadcast %c15_i32_12 : i32 to vector<16x256xi32>
    %31 = arith.andi %29, %30 : vector<16x256xi32>
    %32 = arith.sitofp %31 : vector<16x256xi32> to vector<16x256xbf16>
    %c64 = arith.constant 64 : index
    %c0_13 = arith.constant 0 : index
    %33 = vector.load %arg9[%c64, %c0_13] : memref<256x256xbf16, #tpu.memory_space<vmem>>, vector<16x256xbf16>
    tpu.vector_store %arg9[%c64, %c0_13], %32 {strides = array<i32>} : memref<256x256xbf16, #tpu.memory_space<vmem>>, vector<16x256xbf16>,
    %c20_i32 = arith.constant 20 : i32
    %34 = vector.broadcast %c20_i32 : i32 to vector<16x256xi32>
    %35 = arith.shrsi %3, %34 : vector<16x256xi32>
    %c15_i32_14 = arith.constant 15 : i32
    %36 = vector.broadcast %c15_i32_14 : i32 to vector<16x256xi32>
    %37 = arith.andi %35, %36 : vector<16x256xi32>
    %38 = arith.sitofp %37 : vector<16x256xi32> to vector<16x256xbf16>
    %c80 = arith.constant 80 : index
    %c0_15 = arith.constant 0 : index
    %39 = vector.load %arg9[%c80, %c0_15] : memref<256x256xbf16, #tpu.memory_space<vmem>>, vector<16x256xbf16>
    tpu.vector_store %arg9[%c80, %c0_15], %38 {strides = array<i32>} : memref<256x256xbf16, #tpu.memory_space<vmem>>, vector<16x256xbf16>,
    %c24_i32 = arith.constant 24 : i32
    %40 = vector.broadcast %c24_i32 : i32 to vector<16x256xi32>
    %41 = arith.shrsi %3, %40 : vector<16x256xi32>
    %c15_i32_16 = arith.constant 15 : i32
    %42 = vector.broadcast %c15_i32_16 : i32 to vector<16x256xi32>
    %43 = arith.andi %41, %42 : vector<16x256xi32>
    %44 = arith.sitofp %43 : vector<16x256xi32> to vector<16x256xbf16>
    %c96 = arith.constant 96 : index
    %c0_17 = arith.constant 0 : index
    %45 = vector.load %arg9[%c96, %c0_17] : memref<256x256xbf16, #tpu.memory_space<vmem>>, vector<16x256xbf16>
    tpu.vector_store %arg9[%c96, %c0_17], %44 {strides = array<i32>} : memref<256x256xbf16, #tpu.memory_space<vmem>>, vector<16x256xbf16>,
    %c28_i32 = arith.constant 28 : i32
    %46 = vector.broadcast %c28_i32 : i32 to vector<16x256xi32>
    %47 = arith.shrsi %3, %46 : vector<16x256xi32>
    %c15_i32_18 = arith.constant 15 : i32
    %48 = vector.broadcast %c15_i32_18 : i32 to vector<16x256xi32>
    %49 = arith.andi %47, %48 : vector<16x256xi32>
    %50 = arith.sitofp %49 : vector<16x256xi32> to vector<16x256xbf16>
    %c112 = arith.constant 112 : index
    %c0_19 = arith.constant 0 : index
    %51 = vector.load %arg9[%c112, %c0_19] : memref<256x256xbf16, #tpu.memory_space<vmem>>, vector<16x256xbf16>
    tpu.vector_store %arg9[%c112, %c0_19], %50 {strides = array<i32>} : memref<256x256xbf16, #tpu.memory_space<vmem>>, vector<16x256xbf16>,
    %52 = vector.extract_strided_slice %0 {offsets = [0, 0], sizes = [16, 128], strides = [1, 1]} : vector<16x256xbf16> to vector<16x128xbf16>
    %c0_20 = arith.constant 0 : index
    %c0_21 = arith.constant 0 : index
    %53 = vector.load %arg9[%c0_20, %c0_21] : memref<256x256xbf16, #tpu.memory_space<vmem>>, vector<128x256xbf16>
    %cst = arith.constant dense<0.000000e+00> : vector<16x256xf32>
    %54 = tpu.matmul %52, %53, %cst {dimension_numbers = #tpu.dot_dimension_numbers<[1], [0], [0], [1], [0, 0, 1, 1], [], []>} : vector<16x128xbf16>, vector<128x256xbf16>, vector<16x256xf32> -> vector<16x256xf32>
    %55 = arith.index_cast %2 : i32 to index
    %c0_22 = arith.constant 0 : index
    %56 = vector.load %arg5[%55, %c0_22] : memref<2x256xf32, #tpu.memory_space<vmem>>, vector<1x256xf32>
    %57 = arith.index_cast %2 : i32 to index
    %c0_23 = arith.constant 0 : index
    %58 = vector.load %arg6[%57, %c0_23] : memref<2x256xf32, #tpu.memory_space<vmem>>, vector<1x256xf32>
    %59 = arith.mulf %58, %56 : vector<1x256xf32>
    %60 = arith.extf %52 : vector<16x128xbf16> to vector<16x128xf32>
    %cst_24 = arith.constant dense<0.000000e+00> : vector<16xf32>
    %61 = vector.multi_reduction <add>, %60, %cst_24 [1] : vector<16x128xf32> to vector<16xf32>
    %62 = vector.shape_cast %61 : vector<16xf32> to vector<16x1xf32>
    %63 = vector.broadcast %56 : vector<1x256xf32> to vector<16x256xf32>
    %64 = arith.mulf %54, %63 : vector<16x256xf32>
    %65 = vector.broadcast %62 : vector<16x1xf32> to vector<16x256xf32>
    %66 = vector.broadcast %59 : vector<1x256xf32> to vector<16x256xf32>
    %67 = arith.mulf %65, %66 : vector<16x256xf32>
    %68 = arith.subf %64, %67 : vector<16x256xf32>
    %c2_i32_25 = arith.constant 2 : i32
    %69 = arith.muli %arg2, %c2_i32_25 : i32
    %c1_i32 = arith.constant 1 : i32
    %70 = arith.addi %69, %c1_i32 : i32
    %c16_26 = arith.constant 16 : index
    %c0_27 = arith.constant 0 : index
    %71 = vector.load %arg4[%c16_26, %c0_27] : memref<32x256xi32, #tpu.memory_space<vmem>>, vector<16x256xi32>
    %c0_i32_28 = arith.constant 0 : i32
    %72 = vector.broadcast %c0_i32_28 : i32 to vector<16x256xi32>
    %73 = arith.shrsi %71, %72 : vector<16x256xi32>
    %c15_i32_29 = arith.constant 15 : i32
    %74 = vector.broadcast %c15_i32_29 : i32 to vector<16x256xi32>
    %75 = arith.andi %73, %74 : vector<16x256xi32>
    %76 = arith.sitofp %75 : vector<16x256xi32> to vector<16x256xbf16>
    %c128 = arith.constant 128 : index
    %c0_30 = arith.constant 0 : index
    %77 = vector.load %arg9[%c128, %c0_30] : memref<256x256xbf16, #tpu.memory_space<vmem>>, vector<16x256xbf16>
    tpu.vector_store %arg9[%c128, %c0_30], %76 {strides = array<i32>} : memref<256x256xbf16, #tpu.memory_space<vmem>>, vector<16x256xbf16>,
    %c4_i32_31 = arith.constant 4 : i32
    %78 = vector.broadcast %c4_i32_31 : i32 to vector<16x256xi32>
    %79 = arith.shrsi %71, %78 : vector<16x256xi32>
    %c15_i32_32 = arith.constant 15 : i32
    %80 = vector.broadcast %c15_i32_32 : i32 to vector<16x256xi32>
    %81 = arith.andi %79, %80 : vector<16x256xi32>
    %82 = arith.sitofp %81 : vector<16x256xi32> to vector<16x256xbf16>
    %c144 = arith.constant 144 : index
    %c0_33 = arith.constant 0 : index
    %83 = vector.load %arg9[%c144, %c0_33] : memref<256x256xbf16, #tpu.memory_space<vmem>>, vector<16x256xbf16>
    tpu.vector_store %arg9[%c144, %c0_33], %82 {strides = array<i32>} : memref<256x256xbf16, #tpu.memory_space<vmem>>, vector<16x256xbf16>,
    %c8_i32_34 = arith.constant 8 : i32
    %84 = vector.broadcast %c8_i32_34 : i32 to vector<16x256xi32>
    %85 = arith.shrsi %71, %84 : vector<16x256xi32>
    %c15_i32_35 = arith.constant 15 : i32
    %86 = vector.broadcast %c15_i32_35 : i32 to vector<16x256xi32>
    %87 = arith.andi %85, %86 : vector<16x256xi32>
    %88 = arith.sitofp %87 : vector<16x256xi32> to vector<16x256xbf16>
    %c160 = arith.constant 160 : index
    %c0_36 = arith.constant 0 : index
    %89 = vector.load %arg9[%c160, %c0_36] : memref<256x256xbf16, #tpu.memory_space<vmem>>, vector<16x256xbf16>
    tpu.vector_store %arg9[%c160, %c0_36], %88 {strides = array<i32>} : memref<256x256xbf16, #tpu.memory_space<vmem>>, vector<16x256xbf16>,
    %c12_i32_37 = arith.constant 12 : i32
    %90 = vector.broadcast %c12_i32_37 : i32 to vector<16x256xi32>
    %91 = arith.shrsi %71, %90 : vector<16x256xi32>
    %c15_i32_38 = arith.constant 15 : i32
    %92 = vector.broadcast %c15_i32_38 : i32 to vector<16x256xi32>
    %93 = arith.andi %91, %92 : vector<16x256xi32>
    %94 = arith.sitofp %93 : vector<16x256xi32> to vector<16x256xbf16>
    %c176 = arith.constant 176 : index
    %c0_39 = arith.constant 0 : index
    %95 = vector.load %arg9[%c176, %c0_39] : memref<256x256xbf16, #tpu.memory_space<vmem>>, vector<16x256xbf16>
    tpu.vector_store %arg9[%c176, %c0_39], %94 {strides = array<i32>} : memref<256x256xbf16, #tpu.memory_space<vmem>>, vector<16x256xbf16>,
    %c16_i32_40 = arith.constant 16 : i32
    %96 = vector.broadcast %c16_i32_40 : i32 to vector<16x256xi32>
    %97 = arith.shrsi %71, %96 : vector<16x256xi32>
    %c15_i32_41 = arith.constant 15 : i32
    %98 = vector.broadcast %c15_i32_41 : i32 to vector<16x256xi32>
    %99 = arith.andi %97, %98 : vector<16x256xi32>
    %100 = arith.sitofp %99 : vector<16x256xi32> to vector<16x256xbf16>
    %c192 = arith.constant 192 : index
    %c0_42 = arith.constant 0 : index
    %101 = vector.load %arg9[%c192, %c0_42] : memref<256x256xbf16, #tpu.memory_space<vmem>>, vector<16x256xbf16>
    tpu.vector_store %arg9[%c192, %c0_42], %100 {strides = array<i32>} : memref<256x256xbf16, #tpu.memory_space<vmem>>, vector<16x256xbf16>,
    %c20_i32_43 = arith.constant 20 : i32
    %102 = vector.broadcast %c20_i32_43 : i32 to vector<16x256xi32>
    %103 = arith.shrsi %71, %102 : vector<16x256xi32>
    %c15_i32_44 = arith.constant 15 : i32
    %104 = vector.broadcast %c15_i32_44 : i32 to vector<16x256xi32>
    %105 = arith.andi %103, %104 : vector<16x256xi32>
    %106 = arith.sitofp %105 : vector<16x256xi32> to vector<16x256xbf16>
    %c208 = arith.constant 208 : index
    %c0_45 = arith.constant 0 : index
    %107 = vector.load %arg9[%c208, %c0_45] : memref<256x256xbf16, #tpu.memory_space<vmem>>, vector<16x256xbf16>
    tpu.vector_store %arg9[%c208, %c0_45], %106 {strides = array<i32>} : memref<256x256xbf16, #tpu.memory_space<vmem>>, vector<16x256xbf16>,
    %c24_i32_46 = arith.constant 24 : i32
    %108 = vector.broadcast %c24_i32_46 : i32 to vector<16x256xi32>
    %109 = arith.shrsi %71, %108 : vector<16x256xi32>
    %c15_i32_47 = arith.constant 15 : i32
    %110 = vector.broadcast %c15_i32_47 : i32 to vector<16x256xi32>
    %111 = arith.andi %109, %110 : vector<16x256xi32>
    %112 = arith.sitofp %111 : vector<16x256xi32> to vector<16x256xbf16>
    %c224 = arith.constant 224 : index
    %c0_48 = arith.constant 0 : index
    %113 = vector.load %arg9[%c224, %c0_48] : memref<256x256xbf16, #tpu.memory_space<vmem>>, vector<16x256xbf16>
    tpu.vector_store %arg9[%c224, %c0_48], %112 {strides = array<i32>} : memref<256x256xbf16, #tpu.memory_space<vmem>>, vector<16x256xbf16>,
    %c28_i32_49 = arith.constant 28 : i32
    %114 = vector.broadcast %c28_i32_49 : i32 to vector<16x256xi32>
    %115 = arith.shrsi %71, %114 : vector<16x256xi32>
    %c15_i32_50 = arith.constant 15 : i32
    %116 = vector.broadcast %c15_i32_50 : i32 to vector<16x256xi32>
    %117 = arith.andi %115, %116 : vector<16x256xi32>
    %118 = arith.sitofp %117 : vector<16x256xi32> to vector<16x256xbf16>
    %c240 = arith.constant 240 : index
    %c0_51 = arith.constant 0 : index
    %119 = vector.load %arg9[%c240, %c0_51] : memref<256x256xbf16, #tpu.memory_space<vmem>>, vector<16x256xbf16>
    tpu.vector_store %arg9[%c240, %c0_51], %118 {strides = array<i32>} : memref<256x256xbf16, #tpu.memory_space<vmem>>, vector<16x256xbf16>,
    %120 = vector.extract_strided_slice %0 {offsets = [0, 128], sizes = [16, 128], strides = [1, 1]} : vector<16x256xbf16> to vector<16x128xbf16>
    %c128_52 = arith.constant 128 : index
    %c0_53 = arith.constant 0 : index
    %121 = vector.load %arg9[%c128_52, %c0_53] : memref<256x256xbf16, #tpu.memory_space<vmem>>, vector<128x256xbf16>
    %cst_54 = arith.constant dense<0.000000e+00> : vector<16x256xf32>
    %122 = tpu.matmul %120, %121, %cst_54 {dimension_numbers = #tpu.dot_dimension_numbers<[1], [0], [0], [1], [0, 0, 1, 1], [], []>} : vector<16x128xbf16>, vector<128x256xbf16>, vector<16x256xf32> -> vector<16x256xf32>
    %123 = arith.index_cast %70 : i32 to index
    %c0_55 = arith.constant 0 : index
    %124 = vector.load %arg5[%123, %c0_55] : memref<2x256xf32, #tpu.memory_space<vmem>>, vector<1x256xf32>
    %125 = arith.index_cast %70 : i32 to index
    %c0_56 = arith.constant 0 : index
    %126 = vector.load %arg6[%125, %c0_56] : memref<2x256xf32, #tpu.memory_space<vmem>>, vector<1x256xf32>
    %127 = arith.mulf %126, %124 : vector<1x256xf32>
    %128 = arith.extf %120 : vector<16x128xbf16> to vector<16x128xf32>
    %cst_57 = arith.constant dense<0.000000e+00> : vector<16xf32>
    %129 = vector.multi_reduction <add>, %128, %cst_57 [1] : vector<16x128xf32> to vector<16xf32>
    %130 = vector.shape_cast %129 : vector<16xf32> to vector<16x1xf32>
    %131 = vector.broadcast %124 : vector<1x256xf32> to vector<16x256xf32>
    %132 = arith.mulf %122, %131 : vector<16x256xf32>
    %133 = vector.broadcast %130 : vector<16x1xf32> to vector<16x256xf32>
    %134 = vector.broadcast %127 : vector<1x256xf32> to vector<16x256xf32>
    %135 = arith.mulf %133, %134 : vector<16x256xf32>
    %136 = arith.subf %132, %135 : vector<16x256xf32>
    %137 = arith.addf %68, %136 : vector<16x256xf32>
    %c0_i32_58 = arith.constant 0 : i32
    %138 = arith.cmpi eq, %arg2, %c0_i32_58 : i32
    %139 = arith.extui %138 : i1 to i32
    %c0_i32_59 = arith.constant 0 : i32
    %140 = arith.cmpi ne, %139, %c0_i32_59 : i32
    scf.if %140 {
      %c0_64 = arith.constant 0 : index
      %c0_65 = arith.constant 0 : index
      %147 = vector.load %arg8[%c0_64, %c0_65] : memref<16x256xf32, #tpu.memory_space<vmem>>, vector<16x256xf32>
      tpu.vector_store %arg8[%c0_64, %c0_65], %137 {strides = array<i32>} : memref<16x256xf32, #tpu.memory_space<vmem>>, vector<16x256xf32>,
    } else {
    }
    %c0_i32_60 = arith.constant 0 : i32
    %141 = arith.cmpi ne, %arg2, %c0_i32_60 : i32
    %142 = arith.extui %141 : i1 to i32
    %c0_i32_61 = arith.constant 0 : i32
    %143 = arith.cmpi ne, %142, %c0_i32_61 : i32
    scf.if %143 {
      %c0_64 = arith.constant 0 : index
      %c0_65 = arith.constant 0 : index
      %147 = vector.load %arg8[%c0_64, %c0_65] : memref<16x256xf32, #tpu.memory_space<vmem>>, vector<16x256xf32>
      %148 = arith.addf %147, %137 : vector<16x256xf32>
      %c0_66 = arith.constant 0 : index
      %c0_67 = arith.constant 0 : index
      %149 = vector.load %arg8[%c0_66, %c0_67] : memref<16x256xf32, #tpu.memory_space<vmem>>, vector<16x256xf32>
      tpu.vector_store %arg8[%c0_66, %c0_67], %148 {strides = array<i32>} : memref<16x256xf32, #tpu.memory_space<vmem>>, vector<16x256xf32>,
    } else {
    }
    %c0_i32_62 = arith.constant 0 : i32
    %144 = arith.cmpi eq, %arg2, %c0_i32_62 : i32
    %145 = arith.extui %144 : i1 to i32
    %c0_i32_63 = arith.constant 0 : i32
    %146 = arith.cmpi ne, %145, %c0_i32_63 : i32
    scf.if %146 {
      %c0_64 = arith.constant 0 : index
      %c0_65 = arith.constant 0 : index
      %147 = vector.load %arg8[%c0_64, %c0_65] : memref<16x256xf32, #tpu.memory_space<vmem>>, vector<16x256xf32>
      %c0_66 = arith.constant 0 : index
      %c0_67 = arith.constant 0 : index
      %148 = vector.load %arg7[%c0_66, %c0_67] : memref<1x256xf32, #tpu.memory_space<vmem>>, vector<1x256xf32>
      %149 = vector.broadcast %148 : vector<1x256xf32> to vector<16x256xf32>
      %150 = arith.addf %147, %149 : vector<16x256xf32>
      %c0_68 = arith.constant 0 : index
      %c0_69 = arith.constant 0 : index
      %151 = vector.load %arg8[%c0_68, %c0_69] : memref<16x256xf32, #tpu.memory_space<vmem>>, vector<16x256xf32>
      tpu.vector_store %arg8[%c0_68, %c0_69], %150 {strides = array<i32>} : memref<16x256xf32, #tpu.memory_space<vmem>>, vector<16x256xf32>,
    } else {
    }
    return
  }
  func.func @transform_0(%arg0: i32, %arg1: i32, %arg2: i32) -> (i32, i32) {
    %c0_i32 = arith.constant 0 : i32
    return %arg0, %arg2 : i32, i32
  }
  func.func @transform_1(%arg0: i32, %arg1: i32, %arg2: i32) -> (i32, i32) {
    %c0_i32 = arith.constant 0 : i32
    return %arg2, %arg1 : i32, i32
  }
  func.func @transform_2(%arg0: i32, %arg1: i32, %arg2: i32) -> (i32, i32) {
    %c0_i32 = arith.constant 0 : i32
    %c0_i32_0 = arith.constant 0 : i32
    return %c0_i32, %arg1 : i32, i32
  }
  func.func @transform_3(%arg0: i32, %arg1: i32, %arg2: i32) -> (i32, i32) {
    %c0_i32 = arith.constant 0 : i32
    %c0_i32_0 = arith.constant 0 : i32
    return %c0_i32, %arg1 : i32, i32
  }
  func.func @transform_4(%arg0: i32, %arg1: i32, %arg2: i32) -> (i32, i32) {
    %c0_i32 = arith.constant 0 : i32
    %c0_i32_0 = arith.constant 0 : i32
    return %c0_i32, %arg1 : i32, i32
  }
  func.func @transform_5(%arg0: i32, %arg1: i32, %arg2: i32) -> (i32, i32) {
    %c0_i32 = arith.constant 0 : i32
    return %arg0, %arg1 : i32, i32
  }
}

</mosaic_0001>

<llo_original>
// kernel: tpu_custom_call.1
$region0: #{tpu_custom_call.1}
  #allocation0 [shape = 'u32[]', space=smem, size = 0x4, offset = 0x4, fixed_abs, tag = 'smem constant byte address 0x4 - core index']
  #allocation1 [shape = 'u32[144,128]{1,0:T(1,128)}', space=vmem, size = 0x12000, scoped, tag = 'internal scratch']
  #allocation2 [shape = 'bf16[256,256]{1,0:T(8,128)(2,1)}', space=vmem, size = 0x20000, scoped, tag = 'scratch operand']
  %s0 = inlined_call_operand.hbm [shape: bf16[16,256], index: 0, kind: input, shape index: {}]
  %s1 = inlined_call_operand.hbm [shape: s32[32,512], index: 1, kind: input, shape index: {}]
  %s2 = inlined_call_operand.hbm [shape: f32[2,512], index: 2, kind: input, shape index: {}]
  %s3 = inlined_call_operand.hbm [shape: f32[2,512], index: 3, kind: input, shape index: {}]
  %s4 = inlined_call_operand.vmem [shape: f32[1,512], index: 4, kind: input, shape index: {}]
  %s5 = inlined_call_operand.hbm [shape: f32[16,512], index: 5, kind: output, shape index: {}]
  %s6 = sld [smem:[#allocation0]]
  $region81: #{tpu_custom_call.1} parent=0
    _
  %s8 = ssub.s32 1, %s6
  %s9 = scalar_select 0, %s8, %s6
  $region1: #{tpu_custom_call.1} parent=0
    #allocation3 [shape = 'u8[8192]{0}', space=vmem, size = 0x2000, scoped, tag = 'input window, operand 0, single buffered']
    #allocation4 [shape = 's32[2]{0}', space=sflag, size = 0x8, scoped, tag = 'scoped memory for tpu_custom_call.1']
    #allocation5 [shape = 's32[2]{0}', space=sflag, size = 0x8, scoped, tag = 'scoped memory for tpu_custom_call.1']
    #allocation6 [shape = 'u8[65536]{0}', space=vmem, size = 0x10000, scoped, tag = 'input window, operand 1']
    #allocation7 [shape = 's32[2]{0}', space=sflag, size = 0x8, scoped, tag = 'scoped memory for tpu_custom_call.1']
    #allocation8 [shape = 'u8[4096]{0}', space=vmem, size = 0x1000, scoped, tag = 'input window, operand 2']
    #allocation9 [shape = 'u8[4096]{0}', space=vmem, size = 0x1000, scoped, tag = 'input window, operand 3']
    #allocation10 [shape = 's32[2]{0}', space=sflag, size = 0x8, scoped, tag = 'scoped memory for tpu_custom_call.1']
    #allocation11 [shape = 'u8[32768]{0}', space=vmem, size = 0x8000, scoped, tag = 'output window, operand 0']
    %10 = vsyncpa [#allocation4], 0
    %11 = vsyncpa [#allocation7], 0
    %s12 = scalar_lea.sflag [#allocation7], 1
    %13 = vsyncpa %s12, 0
    %14 = vsyncpa [#allocation10], 0
    %s15 = scalar_lea.sflag [#allocation10], 1
    %16 = vsyncpa %s15, 0
    %17 = vsyncpa [#allocation5], 0
    %s18 = scalar_lea.sflag [#allocation5], 1
    %19 = vsyncpa %s18, 0
    loop: start=0, step=1, limit=4
    $region2: #{tpu_custom_call.1} parent=1 // loop_pre_header
      _
    $region3: #{tpu_custom_call.1} parent=1 // loop_header
      %s21 = sphi 0, %s25
      %p22 = scmp.ge.s32.totalorder %s21, 4
      %s28 = sphi 0, %s47
      %s29 = sphi 0, %s43
      %s30 = sphi 0, %s39
      %s31 = sphi 0, %s28
      %s32 = sphi 0, %s29
      %s33 = sphi 0, %s30
      %s34 = sphi 0, %s31
      %s35 = sphi 0, %s32
      %s36 = sphi 0, %s33
      %s52 = sphi 0, %s54
      %s55 = sphi 0, %s52
      %s56 = sphi 0, %s55
      %s72 = sphi 0, %s56
      %s80 = sphi 0, %s82
      %s83 = sphi 0, %s80
      %s84 = sphi 0, %s83
      %s100 = sphi 0, %s84
      %s106 = sphi 0, %s108
      %s109 = sphi 0, %s106
      %s110 = sphi 0, %s109
      %s126 = sphi 0, %s110
      %s132 = sphi 0, %s134
      %s135 = sphi 0, %s132
      %s136 = sphi 0, %s135
      %s152 = sphi 0, %s136
      %s158 = sphi 0, %s160
      %s161 = sphi 0, %s158
      %s162 = sphi 0, %s161
      %s178 = sphi 0, %s162
      %s186 = sphi 0, %s188
      %s189 = sphi 0, %s186
      %s190 = sphi 0, %s189
      %s206 = sphi 0, %s190
    $region4: #{tpu_custom_call.1} parent=1 // loop_header_branch
      %24 = sbr.rel (%p22) target = $region8
    $region5: #{tpu_custom_call.1} parent=1 // loop_body
      %s26 = ssub.s32 %s21, 1
      %s27 = ssub.s32 %s21, 2
      %s37 = sadd.s32 1, %s30
      %p38 = scmp.ge.s32.totalorder %s37, 1
      %s39 = scalar_select %p38, 0, %s37
      %s40 = sadd.s32 1, %s29
      %s41 = scalar_select %p38, %s40, %s29
      %p42 = scmp.ge.s32.totalorder %s41, 2
      %s43 = scalar_select %p42, 0, %s41
      %s44 = sadd.s32 1, %s28
      %s45 = scalar_select %p42, %s44, %s28
      %p46 = scmp.ge.s32.totalorder %s45, 1
      %s47 = scalar_select %p46, 0, %s45
      %s48 = ssub.s32 %s28, %s47
      %s49 = ssub.s32 %s30, %s39
      %s50 = sor.u32 %s48, %s49
      %p51 = scmp.eq.s32.totalorder %s50, 0
      %s53 = sadd.s32 %s52, 1
      %s54 = scalar_select %p51, %s52, %s53
      %p57 = pneg %p51
      %p58 = scmp.eq.s32.totalorder %s21, 1
      %p59 = por %p57, %p58
      %p60 = scmp.ne.s32.totalorder %s52, %s55
      %p61 = scmp.eq.s32.totalorder %s21, 0
      %p62 = por %p60, %p61
      %p63 = scmp.ne.s32.totalorder %s52, %s55
      %p64 = scmp.eq.s32.totalorder %s26, 1
      %p65 = por %p63, %p64
      %p66 = scmp.ne.s32.totalorder %s55, %s56
      %p67 = scmp.eq.s32.totalorder %s26, 0
      %p68 = por %p66, %p67
      %p69 = scmp.ne.s32.totalorder %s55, %s56
      %p70 = scmp.eq.s32.totalorder %s27, 1
      %p71 = por %p69, %p70
      %p73 = scmp.ne.s32.totalorder %s56, %s72
      %p74 = scmp.eq.s32.totalorder %s27, 0
      %p75 = por %p73, %p74
      %s76 = ssub.s32 %s30, %s39
      %s77 = ssub.s32 %s29, %s43
      %s78 = sor.u32 %s76, %s77
      %p79 = scmp.eq.s32.totalorder %s78, 0
      %s81 = sadd.s32 %s80, 1
      %s82 = scalar_select %p79, %s80, %s81
      %p85 = pneg %p79
      %p86 = scmp.eq.s32.totalorder %s21, 1
      %p87 = por %p85, %p86
      %p88 = scmp.ne.s32.totalorder %s80, %s83
      %p89 = scmp.eq.s32.totalorder %s21, 0
      %p90 = por %p88, %p89
      %p91 = scmp.ne.s32.totalorder %s80, %s83
      %p92 = scmp.eq.s32.totalorder %s26, 1
      %p93 = por %p91, %p92
      %p94 = scmp.ne.s32.totalorder %s83, %s84
      %p95 = scmp.eq.s32.totalorder %s26, 0
      %p96 = por %p94, %p95
      %p97 = scmp.ne.s32.totalorder %s83, %s84
      %p98 = scmp.eq.s32.totalorder %s27, 1
      %p99 = por %p97, %p98
      %p101 = scmp.ne.s32.totalorder %s84, %s100
      %p102 = scmp.eq.s32.totalorder %s27, 0
      %p103 = por %p101, %p102
      %s104 = ssub.s32 %s29, %s43
      %p105 = scmp.eq.s32.totalorder %s104, 0
      %s107 = sadd.s32 %s106, 1
      %s108 = scalar_select %p105, %s106, %s107
      %p111 = pneg %p105
      %p112 = scmp.eq.s32.totalorder %s21, 1
      %p113 = por %p111, %p112
      %p114 = scmp.ne.s32.totalorder %s106, %s109
      %p115 = scmp.eq.s32.totalorder %s21, 0
      %p116 = por %p114, %p115
      %p117 = scmp.ne.s32.totalorder %s106, %s109
      %p118 = scmp.eq.s32.totalorder %s26, 1
      %p119 = por %p117, %p118
      %p120 = scmp.ne.s32.totalorder %s109, %s110
      %p121 = scmp.eq.s32.totalorder %s26, 0
      %p122 = por %p120, %p121
      %p123 = scmp.ne.s32.totalorder %s109, %s110
      %p124 = scmp.eq.s32.totalorder %s27, 1
      %p125 = por %p123, %p124
      %p127 = scmp.ne.s32.totalorder %s110, %s126
      %p128 = scmp.eq.s32.totalorder %s27, 0
      %p129 = por %p127, %p128
      %s130 = ssub.s32 %s29, %s43
      %p131 = scmp.eq.s32.totalorder %s130, 0
      %s133 = sadd.s32 %s132, 1
      %s134 = scalar_select %p131, %s132, %s133
      %p137 = pneg %p131
      %p138 = scmp.eq.s32.totalorder %s21, 1
      %p139 = por %p137, %p138
      %p140 = scmp.ne.s32.totalorder %s132, %s135
      %p141 = scmp.eq.s32.totalorder %s21, 0
      %p142 = por %p140, %p141
      %p143 = scmp.ne.s32.totalorder %s132, %s135
      %p144 = scmp.eq.s32.totalorder %s26, 1
      %p145 = por %p143, %p144
      %p146 = scmp.ne.s32.totalorder %s135, %s136
      %p147 = scmp.eq.s32.totalorder %s26, 0
      %p148 = por %p146, %p147
      %p149 = scmp.ne.s32.totalorder %s135, %s136
      %p150 = scmp.eq.s32.totalorder %s27, 1
      %p151 = por %p149, %p150
      %p153 = scmp.ne.s32.totalorder %s136, %s152
      %p154 = scmp.eq.s32.totalorder %s27, 0
      %p155 = por %p153, %p154
      %s156 = ssub.s32 %s29, %s43
      %p157 = scmp.eq.s32.totalorder %s156, 0
      %s159 = sadd.s32 %s158, 1
      %s160 = scalar_select %p157, %s158, %s159
      %p163 = pneg %p157
      %p164 = scmp.eq.s32.totalorder %s21, 1
      %p165 = por %p163, %p164
      %p166 = scmp.ne.s32.totalorder %s158, %s161
      %p167 = scmp.eq.s32.totalorder %s21, 0
      %p168 = por %p166, %p167
      %p169 = scmp.ne.s32.totalorder %s158, %s161
      %p170 = scmp.eq.s32.totalorder %s26, 1
      %p171 = por %p169, %p170
      %p172 = scmp.ne.s32.totalorder %s161, %s162
      %p173 = scmp.eq.s32.totalorder %s26, 0
      %p174 = por %p172, %p173
      %p175 = scmp.ne.s32.totalorder %s161, %s162
      %p176 = scmp.eq.s32.totalorder %s27, 1
      %p177 = por %p175, %p176
      %p179 = scmp.ne.s32.totalorder %s162, %s178
      %p180 = scmp.eq.s32.totalorder %s27, 0
      %p181 = por %p179, %p180
      %s182 = ssub.s32 %s28, %s47
      %s183 = ssub.s32 %s29, %s43
      %s184 = sor.u32 %s182, %s183
      %p185 = scmp.eq.s32.totalorder %s184, 0
      %s187 = sadd.s32 %s186, 1
      %s188 = scalar_select %p185, %s186, %s187
      %p191 = pneg %p185
      %p192 = scmp.eq.s32.totalorder %s21, 1
      %p193 = por %p191, %p192
      %p194 = scmp.ne.s32.totalorder %s186, %s189
      %p195 = scmp.eq.s32.totalorder %s21, 0
      %p196 = por %p194, %p195
      %p197 = scmp.ne.s32.totalorder %s186, %s189
      %p198 = scmp.eq.s32.totalorder %s26, 1
      %p199 = por %p197, %p198
      %p200 = scmp.ne.s32.totalorder %s189, %s190
      %p201 = scmp.eq.s32.totalorder %s26, 0
      %p202 = por %p200, %p201
      %p203 = scmp.ne.s32.totalorder %s189, %s190
      %p204 = scmp.eq.s32.totalorder %s27, 1
      %p205 = por %p203, %p204
      %p207 = scmp.ne.s32.totalorder %s190, %s206
      %p208 = scmp.eq.s32.totalorder %s27, 0
      %p209 = por %p207, %p208
      %p210 = scmp.le.s32.totalorder 1, %s21
      %p211 = scmp.lt.s32.totalorder %s21, 3
      %p212 = pnand %p210, %p211
      %p213 = pneg %p212
      // Predicated region
      $region9: #{tpu_custom_call.1} parent=5 // pred_check
        _
      $region10: #{tpu_custom_call.1} parent=5 // pred_check_branch
        %215 = sbr.rel (%p212) target = $region12
      $region11: #{tpu_custom_call.1} parent=5 // pred_region
        %s216 = ssub.s32 %s21, 1
        // Predicated region
        $region13: #{tpu_custom_call.1} parent=11 // pred_check
          %p217 = pneg %p68
        $region14: #{tpu_custom_call.1} parent=11 // pred_check_branch
          %219 = sbr.rel (%p217) target = $region16
        $region15: #{tpu_custom_call.1} parent=11 // pred_region
          %s220 = smul.u32 2, %s31
          %s221 = smul.u32 2, %s33
          %s223 = ssub.s32 256, 256
          %224 = vsyncadd [#allocation4], %s223
          %s225 = smul.addr %s220, 2
          %s226 = sadd.s32 %s221, %s225
          %s227 = smul.addr %s226, 64
          %s228 = scalar_lea.hbm %s0, %s227
          %s229 = sshll.u32 [#allocation3], 4
          %s230 = int_to_ptr.vmem [resolvable:$true] %s229
          %235 = dma.hbm_to_vmem [thread:$0]  %s228, 256, %s230, [#allocation4], 128, 128, 8
        $region16: #{tpu_custom_call.1} parent=11 // pred_fallthru
          _
      $region12: #{tpu_custom_call.1} parent=5 // pred_fallthru
        _
      %p236 = scmp.lt.s32.totalorder %s21, 2
      // Predicated region
      $region17: #{tpu_custom_call.1} parent=5 // pred_check
        %p237 = pneg %p236
      $region18: #{tpu_custom_call.1} parent=5 // pred_check_branch
        %239 = sbr.rel (%p237) target = $region20
      $region19: #{tpu_custom_call.1} parent=5 // pred_region
        // Predicated region
        $region21: #{tpu_custom_call.1} parent=19 // pred_check
          %p240 = pneg %p90
        $region22: #{tpu_custom_call.1} parent=19 // pred_check_branch
          %242 = sbr.rel (%p240) target = $region24
        $region23: #{tpu_custom_call.1} parent=19 // pred_region
          %s243 = sand.u32 %s21, 1
          %s244 = scalar_lea.sflag [#allocation7], %s243
          %s245 = sand.u32 %s80, 1
          %s246 = smul.addr %s245, 64
          %s247 = scalar_lea.vmem [#allocation6], %s246
          %s248 = smul.u32 4, %s30
          %s249 = smul.u32 2, %s29
          %s251 = ssub.s32 1024, 1024
          %252 = vsyncadd %s244, %s251
          %s253 = smul.addr %s248, 4
          %s254 = sadd.s32 %s249, %s253
          %s255 = smul.addr %s254, 128
          %s256 = scalar_lea.hbm %s1, %s255
          %s257 = sshll.u32 %s247, 4
          %s258 = int_to_ptr.vmem [resolvable:$true] %s257
          %263 = dma.hbm_to_vmem [thread:$0]  %s256, 1024, %s258, %s244, 512, 256, 16
        $region24: #{tpu_custom_call.1} parent=19 // pred_fallthru
          _
        // Predicated region
        $region25: #{tpu_custom_call.1} parent=19 // pred_check
          %p264 = pneg %p116
        $region26: #{tpu_custom_call.1} parent=19 // pred_check_branch
          %266 = sbr.rel (%p264) target = $region28
        $region27: #{tpu_custom_call.1} parent=19 // pred_region
          %s267 = sand.u32 %s21, 1
          %s268 = scalar_lea.sflag [#allocation7], %s267
          %s269 = sand.u32 %s106, 1
          %s270 = smul.addr %s269, 4
          %s271 = scalar_lea.vmem [#allocation8], %s270
          %s272 = smul.u32 2, %s29
          %s274 = ssub.s32 64, 64
          %275 = vsyncadd %s268, %s274
          %s276 = smul.addr %s272, 32
          %s277 = scalar_lea.hbm %s2, %s276
          %s279 = sshll.u32 %s271, 4
          %s280 = int_to_ptr.vmem [resolvable:$true] %s279
          %282 = dma.hbm_to_vmem [thread:$0]  %s277, 64, %s280, %s268
        $region28: #{tpu_custom_call.1} parent=19 // pred_fallthru
          _
        // Predicated region
        $region29: #{tpu_custom_call.1} parent=19 // pred_check
          %p283 = pneg %p142
        $region30: #{tpu_custom_call.1} parent=19 // pred_check_branch
          %285 = sbr.rel (%p283) target = $region32
        $region31: #{tpu_custom_call.1} parent=19 // pred_region
          %s286 = sand.u32 %s132, 1
          %s287 = scalar_lea.sflag [#allocation10], %s286
          %s288 = sand.u32 %s132, 1
          %s289 = smul.addr %s288, 4
          %s290 = scalar_lea.vmem [#allocation9], %s289
          %s291 = smul.u32 2, %s29
          %s293 = ssub.s32 64, 64
          %294 = vsyncadd %s287, %s293
          %s295 = smul.addr %s291, 32
          %s296 = scalar_lea.hbm %s3, %s295
          %s298 = sshll.u32 %s290, 4
          %s299 = int_to_ptr.vmem [resolvable:$true] %s298
          %301 = dma.hbm_to_vmem [thread:$0]  %s296, 64, %s299, %s287
        $region32: #{tpu_custom_call.1} parent=19 // pred_fallthru
          _
        // Predicated region
        $region33: #{tpu_custom_call.1} parent=19 // pred_check
          %p302 = pneg %p168
        $region34: #{tpu_custom_call.1} parent=19 // pred_check_branch
          %304 = sbr.rel (%p302) target = $region36
        $region35: #{tpu_custom_call.1} parent=19 // pred_region
          %s305 = smul.u32 2, %s29
          %p306 = scmp.lt.s32.totalorder %s305, 3
          %s307 = scalar_select %p306, %s305, 3
          %s308 = scalar_lea.vmem %s4, %s307
          %s309 = smul.u32 2, %s29
        $region36: #{tpu_custom_call.1} parent=19 // pred_fallthru
          _
      $region20: #{tpu_custom_call.1} parent=5 // pred_fallthru
        _
      %p310 = scmp.le.s32.totalorder 1, %s21
      %p311 = scmp.lt.s32.totalorder %s21, 3
      %p312 = pnand %p310, %p311
      %p313 = pneg %p312
      // Predicated region
      $region37: #{tpu_custom_call.1} parent=5 // pred_check
        _
      $region38: #{tpu_custom_call.1} parent=5 // pred_check_branch
        %315 = sbr.rel (%p312) target = $region40
      $region39: #{tpu_custom_call.1} parent=5 // pred_region
        %s316 = ssub.s32 %s21, 1
        // Predicated region
        $region41: #{tpu_custom_call.1} parent=39 // pred_check
          %p317 = pneg %p68
        $region42: #{tpu_custom_call.1} parent=39 // pred_check_branch
          %319 = sbr.rel (%p317) target = $region44
        $region43: #{tpu_custom_call.1} parent=39 // pred_region
          %320 = dma.done [#allocation4], 256
        $region44: #{tpu_custom_call.1} parent=39 // pred_fallthru
          _
        %s321 = sand.u32 %s26, 1
        %s322 = scalar_lea.sflag [#allocation7], %s321
        %s323 = sand.u32 %s83, 1
        %s324 = smul.addr %s323, 64
        %s325 = scalar_lea.vmem [#allocation6], %s324
        // Predicated region
        $region45: #{tpu_custom_call.1} parent=39 // pred_check
          %p326 = pneg %p96
        $region46: #{tpu_custom_call.1} parent=39 // pred_check_branch
          %328 = sbr.rel (%p326) target = $region48
        $region47: #{tpu_custom_call.1} parent=39 // pred_region
          %329 = dma.done %s322, 1024
        $region48: #{tpu_custom_call.1} parent=39 // pred_fallthru
          _
        %s330 = sand.u32 %s26, 1
        %s331 = scalar_lea.sflag [#allocation7], %s330
        %s332 = sand.u32 %s109, 1
        %s333 = smul.addr %s332, 4
        %s334 = scalar_lea.vmem [#allocation8], %s333
        // Predicated region
        $region49: #{tpu_custom_call.1} parent=39 // pred_check
          %p335 = pneg %p122
        $region50: #{tpu_custom_call.1} parent=39 // pred_check_branch
          %337 = sbr.rel (%p335) target = $region52
        $region51: #{tpu_custom_call.1} parent=39 // pred_region
          %338 = dma.done %s331, 64
        $region52: #{tpu_custom_call.1} parent=39 // pred_fallthru
          _
        %s339 = sand.u32 %s135, 1
        %s340 = scalar_lea.sflag [#allocation10], %s339
        %s341 = sand.u32 %s135, 1
        %s342 = smul.addr %s341, 4
        %s343 = scalar_lea.vmem [#allocation9], %s342
        // Predicated region
        $region53: #{tpu_custom_call.1} parent=39 // pred_check
          %p344 = pneg %p148
        $region54: #{tpu_custom_call.1} parent=39 // pred_check_branch
          %346 = sbr.rel (%p344) target = $region56
        $region55: #{tpu_custom_call.1} parent=39 // pred_region
          %347 = dma.done %s340, 64
        $region56: #{tpu_custom_call.1} parent=39 // pred_fallthru
          _
        %p348 = pneg %p68
        %p349 = pneg %p65
        %s350 = sand.u32 %s26, 1
        %s351 = scalar_lea.sflag [#allocation7], %s350
        %s352 = sand.u32 %s83, 1
        %s353 = smul.addr %s352, 64
        %s354 = scalar_lea.vmem [#allocation6], %s353
        %p355 = pneg %p96
        %p356 = pneg %p93
        %s357 = sand.u32 %s26, 1
        %s358 = scalar_lea.sflag [#allocation7], %s357
        %s359 = sand.u32 %s109, 1
        %s360 = smul.addr %s359, 4
        %s361 = scalar_lea.vmem [#allocation8], %s360
        %p362 = pneg %p122
        %p363 = pneg %p119
        %s364 = sand.u32 %s135, 1
        %s365 = scalar_lea.sflag [#allocation10], %s364
        %s366 = sand.u32 %s135, 1
        %s367 = smul.addr %s366, 4
        %s368 = scalar_lea.vmem [#allocation9], %s367
        %p369 = pneg %p148
        %p370 = pneg %p145
        %s371 = smul.u32 2, %s32
        %p372 = scmp.lt.s32.totalorder %s371, 3
        %s373 = scalar_select %p372, %s371, 3
        %s374 = scalar_lea.vmem %s4, %s373
        %p375 = pneg %p174
        %p376 = pneg %p171
        %p377 = pneg %p202
        %p378 = pneg %p199
        %s379 = sand.u32 %s189, 1
        %s380 = scalar_lea.sflag [#allocation5], %s379
        %s381 = sand.u32 %s189, 1
        %s382 = smul.addr %s381, 32
        %s383 = scalar_lea.vmem [#allocation11], %s382
        %s384 = smul.u32 2, %s31
        %s385 = smul.u32 2, %s33
        %s386 = smul.u32 4, %s33
        %s387 = smul.u32 2, %s32
        %s388 = smul.u32 2, %s32
        %s389 = smul.u32 2, %s32
        %s390 = smul.u32 2, %s32
        %p391 = scmp.lt.s32.totalorder %s390, 3
        %s392 = scalar_select %p391, %s390, 3
        %s393 = scalar_lea.vmem %s4, %s392
        %s394 = smul.u32 2, %s32
        %s395 = smul.u32 2, %s31
        %s396 = smul.u32 2, %s32
        %v398 = vld [vmem:[#allocation3] sm:$0xff]
        %v399 = vld [vmem:[#allocation3 + $0x8] sm:$0xff]
        %s400 = smul.u32 %s33, 2
        %v401 = vld [vmem:[%s325] sm:$0xff]
        %v402 = vld [vmem:[%s325 + $0x8] sm:$0xff]
        %v403 = vld [vmem:[%s325 + $0x10] sm:$0xff]
        %v404 = vld [vmem:[%s325 + $0x18] sm:$0xff]
        %v405 = vand.u32 %v401, 15
        %v406 = vand.u32 %v402, 15
        %v407 = vand.u32 %v403, 15
        %v408 = vand.u32 %v404, 15
        %v409 = vcvt.s32.f32 %v405
        %v410 = vcvt.s32.f32 %v406
        %v411 = vcvt.s32.f32 %v407
        %v412 = vcvt.s32.f32 %v408
        %v413 = vpack.c.bf16 %v411, %v409
        %v414 = vpack.c.bf16 %v412, %v410
        %v417 = vunpack.c.l.b16 %v413
        %v418 = vunpack.c.l.b16 %v414
        %v419 = vunpack.c.h.b16 %v413
        %v420 = vunpack.c.h.b16 %v414
        %v421 = vpack.c.b16 %v418, %v417
        %v422 = vpack.c.b16 %v420, %v419
        %425 = vst [vmem:[#allocation2] sm:$0xff] %v421
        %426 = vst [vmem:[#allocation2 + $0x8] sm:$0xff] %v422
        %v427 = vshra.s32 %v401, 4
        %v428 = vshra.s32 %v402, 4
        %v429 = vshra.s32 %v403, 4
        %v430 = vshra.s32 %v404, 4
        %v431 = vand.u32 %v427, 15
        %v432 = vand.u32 %v428, 15
        %v433 = vand.u32 %v429, 15
        %v434 = vand.u32 %v430, 15
        %v435 = vcvt.s32.f32 %v431
        %v436 = vcvt.s32.f32 %v432
        %v437 = vcvt.s32.f32 %v433
        %v438 = vcvt.s32.f32 %v434
        %v439 = vpack.c.bf16 %v437, %v435
        %v440 = vpack.c.bf16 %v438, %v436
        %v443 = vunpack.c.l.b16 %v439
        %v444 = vunpack.c.l.b16 %v440
        %v445 = vunpack.c.h.b16 %v439
        %v446 = vunpack.c.h.b16 %v440
        %v447 = vpack.c.b16 %v444, %v443
        %v448 = vpack.c.b16 %v446, %v445
        %451 = vst [vmem:[#allocation2 + $0x10] sm:$0xff] %v447
        %452 = vst [vmem:[#allocation2 + $0x18] sm:$0xff] %v448
        %v453 = vshra.s32 %v401, 8
        %v454 = vshra.s32 %v402, 8
        %v455 = vshra.s32 %v403, 8
        %v456 = vshra.s32 %v404, 8
        %v457 = vand.u32 %v453, 15
        %v458 = vand.u32 %v454, 15
        %v459 = vand.u32 %v455, 15
        %v460 = vand.u32 %v456, 15
        %v461 = vcvt.s32.f32 %v457
        %v462 = vcvt.s32.f32 %v458
        %v463 = vcvt.s32.f32 %v459
        %v464 = vcvt.s32.f32 %v460
        %v465 = vpack.c.bf16 %v463, %v461
        %v466 = vpack.c.bf16 %v464, %v462
        %v469 = vunpack.c.l.b16 %v465
        %v470 = vunpack.c.l.b16 %v466
        %v471 = vunpack.c.h.b16 %v465
        %v472 = vunpack.c.h.b16 %v466
        %v473 = vpack.c.b16 %v470, %v469
        %v474 = vpack.c.b16 %v472, %v471
        %477 = vst [vmem:[#allocation2 + $0x20] sm:$0xff] %v473
        %478 = vst [vmem:[#allocation2 + $0x28] sm:$0xff] %v474
        %v479 = vshra.s32 %v401, 12
        %v480 = vshra.s32 %v402, 12
        %v481 = vshra.s32 %v403, 12
        %v482 = vshra.s32 %v404, 12
        %v483 = vand.u32 %v479, 15
        %v484 = vand.u32 %v480, 15
        %v485 = vand.u32 %v481, 15
        %v486 = vand.u32 %v482, 15
        %v487 = vcvt.s32.f32 %v483
        %v488 = vcvt.s32.f32 %v484
        %v489 = vcvt.s32.f32 %v485
        %v490 = vcvt.s32.f32 %v486
        %v491 = vpack.c.bf16 %v489, %v487
        %v492 = vpack.c.bf16 %v490, %v488
        %v495 = vunpack.c.l.b16 %v491
        %v496 = vunpack.c.l.b16 %v492
        %v497 = vunpack.c.h.b16 %v491
        %v498 = vunpack.c.h.b16 %v492
        %v499 = vpack.c.b16 %v496, %v495
        %v500 = vpack.c.b16 %v498, %v497
        %503 = vst [vmem:[#allocation2 + $0x30] sm:$0xff] %v499
        %504 = vst [vmem:[#allocation2 + $0x38] sm:$0xff] %v500
        %v505 = vshra.s32 %v401, 16
        %v506 = vshra.s32 %v402, 16
        %v507 = vshra.s32 %v403, 16
        %v508 = vshra.s32 %v404, 16
        %v509 = vand.u32 %v505, 15
        %v510 = vand.u32 %v506, 15
        %v511 = vand.u32 %v507, 15
        %v512 = vand.u32 %v508, 15
        %v513 = vcvt.s32.f32 %v509
        %v514 = vcvt.s32.f32 %v510
        %v515 = vcvt.s32.f32 %v511
        %v516 = vcvt.s32.f32 %v512
        %v517 = vpack.c.bf16 %v515, %v513
        %v518 = vpack.c.bf16 %v516, %v514
        %v521 = vunpack.c.l.b16 %v517
        %v522 = vunpack.c.l.b16 %v518
        %v523 = vunpack.c.h.b16 %v517
        %v524 = vunpack.c.h.b16 %v518
        %v525 = vpack.c.b16 %v522, %v521
        %v526 = vpack.c.b16 %v524, %v523
        %529 = vst [vmem:[#allocation2 + $0x40] sm:$0xff] %v525
        %530 = vst [vmem:[#allocation2 + $0x48] sm:$0xff] %v526
        %v531 = vshra.s32 %v401, 20
        %v532 = vshra.s32 %v402, 20
        %v533 = vshra.s32 %v403, 20
        %v534 = vshra.s32 %v404, 20
        %v535 = vand.u32 %v531, 15
        %v536 = vand.u32 %v532, 15
        %v537 = vand.u32 %v533, 15
        %v538 = vand.u32 %v534, 15
        %v539 = vcvt.s32.f32 %v535
        %v540 = vcvt.s32.f32 %v536
        %v541 = vcvt.s32.f32 %v537
        %v542 = vcvt.s32.f32 %v538
        %v543 = vpack.c.bf16 %v541, %v539
        %v544 = vpack.c.bf16 %v542, %v540
        %v547 = vunpack.c.l.b16 %v543
        %v548 = vunpack.c.l.b16 %v544
        %v549 = vunpack.c.h.b16 %v543
        %v550 = vunpack.c.h.b16 %v544
        %v551 = vpack.c.b16 %v548, %v547
        %v552 = vpack.c.b16 %v550, %v549
        %555 = vst [vmem:[#allocation2 + $0x50] sm:$0xff] %v551
        %556 = vst [vmem:[#allocation2 + $0x58] sm:$0xff] %v552
        %v557 = vshra.s32 %v401, 24
        %v558 = vshra.s32 %v402, 24
        %v559 = vshra.s32 %v403, 24
        %v560 = vshra.s32 %v404, 24
        %v561 = vand.u32 %v557, 15
        %v562 = vand.u32 %v558, 15
        %v563 = vand.u32 %v559, 15
        %v564 = vand.u32 %v560, 15
        %v565 = vcvt.s32.f32 %v561
        %v566 = vcvt.s32.f32 %v562
        %v567 = vcvt.s32.f32 %v563
        %v568 = vcvt.s32.f32 %v564
        %v569 = vpack.c.bf16 %v567, %v565
        %v570 = vpack.c.bf16 %v568, %v566
        %v573 = vunpack.c.l.b16 %v569
        %v574 = vunpack.c.l.b16 %v570
        %v575 = vunpack.c.h.b16 %v569
        %v576 = vunpack.c.h.b16 %v570
        %v577 = vpack.c.b16 %v574, %v573
        %v578 = vpack.c.b16 %v576, %v575
        %581 = vst [vmem:[#allocation2 + $0x60] sm:$0xff] %v577
        %582 = vst [vmem:[#allocation2 + $0x68] sm:$0xff] %v578
        %v583 = vshra.s32 %v401, 28
        %v584 = vshra.s32 %v402, 28
        %v585 = vshra.s32 %v403, 28
        %v586 = vshra.s32 %v404, 28
        %v587 = vand.u32 %v583, 15
        %v588 = vand.u32 %v584, 15
        %v589 = vand.u32 %v585, 15
        %v590 = vand.u32 %v586, 15
        %v591 = vcvt.s32.f32 %v587
        %v592 = vcvt.s32.f32 %v588
        %v593 = vcvt.s32.f32 %v589
        %v594 = vcvt.s32.f32 %v590
        %v595 = vpack.c.bf16 %v593, %v591
        %v596 = vpack.c.bf16 %v594, %v592
        %v599 = vunpack.c.l.b16 %v595
        %v600 = vunpack.c.l.b16 %v596
        %v601 = vunpack.c.h.b16 %v595
        %v602 = vunpack.c.h.b16 %v596
        %v603 = vpack.c.b16 %v600, %v599
        %v604 = vpack.c.b16 %v602, %v601
        %607 = vst [vmem:[#allocation2 + $0x70] sm:$0xff] %v603
        %608 = vst [vmem:[#allocation2 + $0x78] sm:$0xff] %v604
        %v609 = vld [vmem:[#allocation2] sm:$0xff]
        %v610 = vld [vmem:[#allocation2 + $0x8] sm:$0xff]
        %v611 = vld [vmem:[#allocation2 + $0x10] sm:$0xff]
        %v612 = vld [vmem:[#allocation2 + $0x18] sm:$0xff]
        %v613 = vld [vmem:[#allocation2 + $0x20] sm:$0xff]
        %v614 = vld [vmem:[#allocation2 + $0x28] sm:$0xff]
        %v615 = vld [vmem:[#allocation2 + $0x30] sm:$0xff]
        %v616 = vld [vmem:[#allocation2 + $0x38] sm:$0xff]
        %v617 = vld [vmem:[#allocation2 + $0x40] sm:$0xff]
        %v618 = vld [vmem:[#allocation2 + $0x48] sm:$0xff]
        %v619 = vld [vmem:[#allocation2 + $0x50] sm:$0xff]
        %v620 = vld [vmem:[#allocation2 + $0x58] sm:$0xff]
        %v621 = vld [vmem:[#allocation2 + $0x60] sm:$0xff]
        %v622 = vld [vmem:[#allocation2 + $0x68] sm:$0xff]
        %v623 = vld [vmem:[#allocation2 + $0x70] sm:$0xff]
        %v624 = vld [vmem:[#allocation2 + $0x78] sm:$0xff]
        %v627 = vunpack.c.l.b16 %v398
        %v628 = vunpack.c.l.b16 %v399
        %v629 = vpack.c.b16 %v628, %v627
        %v647 = vunpack.c.l.b16 %v609
        %v648 = vunpack.c.h.b16 %v609
        %v649 = vunpack.c.l.b16 %v610
        %v650 = vunpack.c.h.b16 %v610
        %v651 = vunpack.c.l.b16 %v611
        %v652 = vunpack.c.h.b16 %v611
        %v653 = vunpack.c.l.b16 %v612
        %v654 = vunpack.c.h.b16 %v612
        %v655 = vunpack.c.l.b16 %v613
        %v656 = vunpack.c.h.b16 %v613
        %v657 = vunpack.c.l.b16 %v614
        %v658 = vunpack.c.h.b16 %v614
        %v659 = vunpack.c.l.b16 %v615
        %v660 = vunpack.c.h.b16 %v615
        %v661 = vunpack.c.l.b16 %v616
        %v662 = vunpack.c.h.b16 %v616
        %v663 = vunpack.c.l.b16 %v617
        %v664 = vunpack.c.h.b16 %v617
        %v665 = vunpack.c.l.b16 %v618
        %v666 = vunpack.c.h.b16 %v618
        %v667 = vunpack.c.l.b16 %v619
        %v668 = vunpack.c.h.b16 %v619
        %v669 = vunpack.c.l.b16 %v620
        %v670 = vunpack.c.h.b16 %v620
        %v671 = vunpack.c.l.b16 %v621
        %v672 = vunpack.c.h.b16 %v621
        %v673 = vunpack.c.l.b16 %v622
        %v674 = vunpack.c.h.b16 %v622
        %v675 = vunpack.c.l.b16 %v623
        %v676 = vunpack.c.h.b16 %v623
        %v677 = vunpack.c.l.b16 %v624
        %v678 = vunpack.c.h.b16 %v624
        %v679 = vpack.c.b16 %v649, %v647
        %v680 = vpack.c.b16 %v650, %v648
        %v681 = vpack.c.b16 %v653, %v651
        %v682 = vpack.c.b16 %v654, %v652
        %v683 = vpack.c.b16 %v657, %v655
        %v684 = vpack.c.b16 %v658, %v656
        %v685 = vpack.c.b16 %v661, %v659
        %v686 = vpack.c.b16 %v662, %v660
        %v687 = vpack.c.b16 %v665, %v663
        %v688 = vpack.c.b16 %v666, %v664
        %v689 = vpack.c.b16 %v669, %v667
        %v690 = vpack.c.b16 %v670, %v668
        %v691 = vpack.c.b16 %v673, %v671
        %v692 = vpack.c.b16 %v674, %v672
        %v693 = vpack.c.b16 %v677, %v675
        %v694 = vpack.c.b16 %v678, %v676
        %711 = vmatprep.subr.bf16.mxu0 %v694
        %712 = vmatpush1.bf16.msra.mxu0 %v693
        %713 = vmatprep.subr.bf16.mxu0 %v692
        %714 = vmatpush1.bf16.msra.mxu0 %v691
        %715 = vmatprep.subr.bf16.mxu0 %v690
        %716 = vmatpush1.bf16.msra.mxu0 %v689
        %717 = vmatprep.subr.bf16.mxu0 %v688
        %718 = vmatpush1.bf16.msra.mxu0 %v687
        %719 = vmatprep.subr.bf16.mxu0 %v686
        %720 = vmatpush1.bf16.msra.mxu0 %v685
        %721 = vmatprep.subr.bf16.mxu0 %v684
        %722 = vmatpush1.bf16.msra.mxu0 %v683
        %723 = vmatprep.subr.bf16.mxu0 %v682
        %724 = vmatpush1.bf16.msra.mxu0 %v681
        %725 = vmatprep.subr.bf16.mxu0 %v680
        %726 = vmatpush1.bf16.msra.mxu0 %v679
        %727 = vmatprep.subr.bf16.mxu0 0
        %728 = vmatpush2.bf16.msra.mxu0 0
        %729 = vmatprep.subr.bf16.mxu0 0
        %730 = vmatpush2.bf16.msra.mxu0 0
        %731 = vmatprep.subr.bf16.mxu0 0
        %732 = vmatpush2.bf16.msra.mxu0 0
        %733 = vmatprep.subr.bf16.mxu0 0
        %734 = vmatpush2.bf16.msra.mxu0 0
        %735 = vmatprep.subr.bf16.mxu0 0
        %736 = vmatpush2.bf16.msra.mxu0 0
        %737 = vmatprep.subr.bf16.mxu0 0
        %738 = vmatpush2.bf16.msra.mxu0 0
        %739 = vmatprep.subr.bf16.mxu0 0
        %740 = vmatpush2.bf16.msra.mxu0 0
        %741 = vmatprep.subr.bf16.mxu0 0
        %742 = vmatpush2.bf16.msra.mxu0 0
        %743 = vmatprep.mubr.bf16.mxu0 0
        %744 = vmatmul.mubr.bf16.gmra.mxu0 %v629
        %v745 = vpop.f32.mrf.mxu0
        %v746 = vadd.f32 0.0, %v745
        %v747 = vpop.f32.mrf.mxu0
        %v748 = vadd.f32 0.0, %v747
        %v749 = vpop.f32.mrf.mxu0
        %v750 = vadd.f32 0.0, %v749
        %v751 = vpop.f32.mrf.mxu0
        %v752 = vadd.f32 0.0, %v751
        %753 = vdwg.mxu0
        %s754 = sshra.s32 %s400, 1
        %s755 = sand.u32 %s400, 1
        %s756 = smul.u32 %s754, 2
        %s757 = smul.addr %s756, 2
        %s758 = scalar_lea.vmem %s334, %s757 [#allocation8]
        %v759 = vld [vmem:[%s758] ss:$2 sm:$0x3]
        %s760 = smul.addr %s756, 2
        %s761 = scalar_lea.vmem %s343, %s760 [#allocation9]
        %v762 = vld [vmem:[%s761] ss:$2 sm:$0x3]
        %v763 = vmul.f32 %v762, %v759
        %v764 = vunpack.c.l.bf16 %v398
        %v765 = vunpack.c.l.bf16 %v399
        %766 = vadd.xlane.f32.xlu0 %v764
        %v767 = vpop.xlane.xlu0 %766
        %768 = vadd.xlane.f32.xlu0 %v765
        %v769 = vpop.xlane.xlu0 %768
        %v771 = vlaneseq
        %v772 = vshrl.u32 %v771, 7
        %v773 = vsub.s32 0, %v772
        %v774 = vrot.slane %v759, %v773
        %v775 = vlaneseq
        %v776 = vshrl.u32 %v775, 7
        %v777 = vsub.s32 1, %v776
        %v778 = vrot.slane %v759, %v777
        %v781 = vmul.f32 %v746, %v774
        %v782 = vmul.f32 %v748, %v778
        %v783 = vmul.f32 %v750, %v774
        %v784 = vmul.f32 %v752, %v778
        %v786 = vlaneseq
        %v787 = vshrl.u32 %v786, 7
        %v788 = vsub.s32 0, %v787
        %v789 = vrot.slane %v763, %v788
        %v790 = vlaneseq
        %v791 = vshrl.u32 %v790, 7
        %v792 = vsub.s32 1, %v791
        %v793 = vrot.slane %v763, %v792
        %v796 = vmul.f32 %v767, %v789
        %v797 = vmul.f32 %v767, %v793
        %v798 = vmul.f32 %v769, %v789
        %v799 = vmul.f32 %v769, %v793
        %v800 = vsub.f32 %v781, %v796
        %v801 = vsub.f32 %v782, %v797
        %v802 = vsub.f32 %v783, %v798
        %v803 = vsub.f32 %v784, %v799
        %s804 = sadd.s32 %s400, 1
        %v805 = vld [vmem:[%s325 + $0x20] sm:$0xff]
        %v806 = vld [vmem:[%s325 + $0x28] sm:$0xff]
        %v807 = vld [vmem:[%s325 + $0x30] sm:$0xff]
        %v808 = vld [vmem:[%s325 + $0x38] sm:$0xff]
        %v809 = vand.u32 %v805, 15
        %v810 = vand.u32 %v806, 15
        %v811 = vand.u32 %v807, 15
        %v812 = vand.u32 %v808, 15
        %v813 = vcvt.s32.f32 %v809
        %v814 = vcvt.s32.f32 %v810
        %v815 = vcvt.s32.f32 %v811
        %v816 = vcvt.s32.f32 %v812
        %v817 = vpack.c.bf16 %v815, %v813
        %v818 = vpack.c.bf16 %v816, %v814
        %v821 = vunpack.c.l.b16 %v817
        %v822 = vunpack.c.l.b16 %v818
        %v823 = vunpack.c.h.b16 %v817
        %v824 = vunpack.c.h.b16 %v818
        %v825 = vpack.c.b16 %v822, %v821
        %v826 = vpack.c.b16 %v824, %v823
        %829 = vst [vmem:[#allocation2 + $0x80] sm:$0xff] %v825
        %830 = vst [vmem:[#allocation2 + $0x88] sm:$0xff] %v826
        %v831 = vshra.s32 %v805, 4
        %v832 = vshra.s32 %v806, 4
        %v833 = vshra.s32 %v807, 4
        %v834 = vshra.s32 %v808, 4
        %v835 = vand.u32 %v831, 15
        %v836 = vand.u32 %v832, 15
        %v837 = vand.u32 %v833, 15
        %v838 = vand.u32 %v834, 15
        %v839 = vcvt.s32.f32 %v835
        %v840 = vcvt.s32.f32 %v836
        %v841 = vcvt.s32.f32 %v837
        %v842 = vcvt.s32.f32 %v838
        %v843 = vpack.c.bf16 %v841, %v839
        %v844 = vpack.c.bf16 %v842, %v840
        %v847 = vunpack.c.l.b16 %v843
        %v848 = vunpack.c.l.b16 %v844
        %v849 = vunpack.c.h.b16 %v843
        %v850 = vunpack.c.h.b16 %v844
        %v851 = vpack.c.b16 %v848, %v847
        %v852 = vpack.c.b16 %v850, %v849
        %855 = vst [vmem:[#allocation2 + $0x90] sm:$0xff] %v851
        %856 = vst [vmem:[#allocation2 + $0x98] sm:$0xff] %v852
        %v857 = vshra.s32 %v805, 8
        %v858 = vshra.s32 %v806, 8
        %v859 = vshra.s32 %v807, 8
        %v860 = vshra.s32 %v808, 8
        %v861 = vand.u32 %v857, 15
        %v862 = vand.u32 %v858, 15
        %v863 = vand.u32 %v859, 15
        %v864 = vand.u32 %v860, 15
        %v865 = vcvt.s32.f32 %v861
        %v866 = vcvt.s32.f32 %v862
        %v867 = vcvt.s32.f32 %v863
        %v868 = vcvt.s32.f32 %v864
        %v869 = vpack.c.bf16 %v867, %v865
        %v870 = vpack.c.bf16 %v868, %v866
        %v873 = vunpack.c.l.b16 %v869
        %v874 = vunpack.c.l.b16 %v870
        %v875 = vunpack.c.h.b16 %v869
        %v876 = vunpack.c.h.b16 %v870
        %v877 = vpack.c.b16 %v874, %v873
        %v878 = vpack.c.b16 %v876, %v875
        %881 = vst [vmem:[#allocation2 + $0xa0] sm:$0xff] %v877
        %882 = vst [vmem:[#allocation2 + $0xa8] sm:$0xff] %v878
        %v883 = vshra.s32 %v805, 12
        %v884 = vshra.s32 %v806, 12
        %v885 = vshra.s32 %v807, 12
        %v886 = vshra.s32 %v808, 12
        %v887 = vand.u32 %v883, 15
        %v888 = vand.u32 %v884, 15
        %v889 = vand.u32 %v885, 15
        %v890 = vand.u32 %v886, 15
        %v891 = vcvt.s32.f32 %v887
        %v892 = vcvt.s32.f32 %v888
        %v893 = vcvt.s32.f32 %v889
        %v894 = vcvt.s32.f32 %v890
        %v895 = vpack.c.bf16 %v893, %v891
        %v896 = vpack.c.bf16 %v894, %v892
        %v899 = vunpack.c.l.b16 %v895
        %v900 = vunpack.c.l.b16 %v896
        %v901 = vunpack.c.h.b16 %v895
        %v902 = vunpack.c.h.b16 %v896
        %v903 = vpack.c.b16 %v900, %v899
        %v904 = vpack.c.b16 %v902, %v901
        %907 = vst [vmem:[#allocation2 + $0xb0] sm:$0xff] %v903
        %908 = vst [vmem:[#allocation2 + $0xb8] sm:$0xff] %v904
        %v909 = vshra.s32 %v805, 16
        %v910 = vshra.s32 %v806, 16
        %v911 = vshra.s32 %v807, 16
        %v912 = vshra.s32 %v808, 16
        %v913 = vand.u32 %v909, 15
        %v914 = vand.u32 %v910, 15
        %v915 = vand.u32 %v911, 15
        %v916 = vand.u32 %v912, 15
        %v917 = vcvt.s32.f32 %v913
        %v918 = vcvt.s32.f32 %v914
        %v919 = vcvt.s32.f32 %v915
        %v920 = vcvt.s32.f32 %v916
        %v921 = vpack.c.bf16 %v919, %v917
        %v922 = vpack.c.bf16 %v920, %v918
        %v925 = vunpack.c.l.b16 %v921
        %v926 = vunpack.c.l.b16 %v922
        %v927 = vunpack.c.h.b16 %v921
        %v928 = vunpack.c.h.b16 %v922
        %v929 = vpack.c.b16 %v926, %v925
        %v930 = vpack.c.b16 %v928, %v927
        %933 = vst [vmem:[#allocation2 + $0xc0] sm:$0xff] %v929
        %934 = vst [vmem:[#allocation2 + $0xc8] sm:$0xff] %v930
        %v935 = vshra.s32 %v805, 20
        %v936 = vshra.s32 %v806, 20
        %v937 = vshra.s32 %v807, 20
        %v938 = vshra.s32 %v808, 20
        %v939 = vand.u32 %v935, 15
        %v940 = vand.u32 %v936, 15
        %v941 = vand.u32 %v937, 15
        %v942 = vand.u32 %v938, 15
        %v943 = vcvt.s32.f32 %v939
        %v944 = vcvt.s32.f32 %v940
        %v945 = vcvt.s32.f32 %v941
        %v946 = vcvt.s32.f32 %v942
        %v947 = vpack.c.bf16 %v945, %v943
        %v948 = vpack.c.bf16 %v946, %v944
        %v951 = vunpack.c.l.b16 %v947
        %v952 = vunpack.c.l.b16 %v948
        %v953 = vunpack.c.h.b16 %v947
        %v954 = vunpack.c.h.b16 %v948
        %v955 = vpack.c.b16 %v952, %v951
        %v956 = vpack.c.b16 %v954, %v953
        %959 = vst [vmem:[#allocation2 + $0xd0] sm:$0xff] %v955
        %960 = vst [vmem:[#allocation2 + $0xd8] sm:$0xff] %v956
        %v961 = vshra.s32 %v805, 24
        %v962 = vshra.s32 %v806, 24
        %v963 = vshra.s32 %v807, 24
        %v964 = vshra.s32 %v808, 24
        %v965 = vand.u32 %v961, 15
        %v966 = vand.u32 %v962, 15
        %v967 = vand.u32 %v963, 15
        %v968 = vand.u32 %v964, 15
        %v969 = vcvt.s32.f32 %v965
        %v970 = vcvt.s32.f32 %v966
        %v971 = vcvt.s32.f32 %v967
        %v972 = vcvt.s32.f32 %v968
        %v973 = vpack.c.bf16 %v971, %v969
        %v974 = vpack.c.bf16 %v972, %v970
        %v977 = vunpack.c.l.b16 %v973
        %v978 = vunpack.c.l.b16 %v974
        %v979 = vunpack.c.h.b16 %v973
        %v980 = vunpack.c.h.b16 %v974
        %v981 = vpack.c.b16 %v978, %v977
        %v982 = vpack.c.b16 %v980, %v979
        %985 = vst [vmem:[#allocation2 + $0xe0] sm:$0xff] %v981
        %986 = vst [vmem:[#allocation2 + $0xe8] sm:$0xff] %v982
        %v987 = vshra.s32 %v805, 28
        %v988 = vshra.s32 %v806, 28
        %v989 = vshra.s32 %v807, 28
        %v990 = vshra.s32 %v808, 28
        %v991 = vand.u32 %v987, 15
        %v992 = vand.u32 %v988, 15
        %v993 = vand.u32 %v989, 15
        %v994 = vand.u32 %v990, 15
        %v995 = vcvt.s32.f32 %v991
        %v996 = vcvt.s32.f32 %v992
        %v997 = vcvt.s32.f32 %v993
        %v998 = vcvt.s32.f32 %v994
        %v999 = vpack.c.bf16 %v997, %v995
        %v1000 = vpack.c.bf16 %v998, %v996
        %v1003 = vunpack.c.l.b16 %v999
        %v1004 = vunpack.c.l.b16 %v1000
        %v1005 = vunpack.c.h.b16 %v999
        %v1006 = vunpack.c.h.b16 %v1000
        %v1007 = vpack.c.b16 %v1004, %v1003
        %v1008 = vpack.c.b16 %v1006, %v1005
        %1011 = vst [vmem:[#allocation2 + $0xf0] sm:$0xff] %v1007
        %1012 = vst [vmem:[#allocation2 + $0xf8] sm:$0xff] %v1008
        %v1013 = vld [vmem:[#allocation2 + $0x80] sm:$0xff]
        %v1014 = vld [vmem:[#allocation2 + $0x88] sm:$0xff]
        %v1015 = vld [vmem:[#allocation2 + $0x90] sm:$0xff]
        %v1016 = vld [vmem:[#allocation2 + $0x98] sm:$0xff]
        %v1017 = vld [vmem:[#allocation2 + $0xa0] sm:$0xff]
        %v1018 = vld [vmem:[#allocation2 + $0xa8] sm:$0xff]
        %v1019 = vld [vmem:[#allocation2 + $0xb0] sm:$0xff]
        %v1020 = vld [vmem:[#allocation2 + $0xb8] sm:$0xff]
        %v1021 = vld [vmem:[#allocation2 + $0xc0] sm:$0xff]
        %v1022 = vld [vmem:[#allocation2 + $0xc8] sm:$0xff]
        %v1023 = vld [vmem:[#allocation2 + $0xd0] sm:$0xff]
        %v1024 = vld [vmem:[#allocation2 + $0xd8] sm:$0xff]
        %v1025 = vld [vmem:[#allocation2 + $0xe0] sm:$0xff]
        %v1026 = vld [vmem:[#allocation2 + $0xe8] sm:$0xff]
        %v1027 = vld [vmem:[#allocation2 + $0xf0] sm:$0xff]
        %v1028 = vld [vmem:[#allocation2 + $0xf8] sm:$0xff]
        %v1029 = vunpack.c.h.b16 %v398
        %v1030 = vunpack.c.h.b16 %v399
        %v1031 = vpack.c.b16 %v1030, %v1029
        %v1049 = vunpack.c.l.b16 %v1013
        %v1050 = vunpack.c.h.b16 %v1013
        %v1051 = vunpack.c.l.b16 %v1014
        %v1052 = vunpack.c.h.b16 %v1014
        %v1053 = vunpack.c.l.b16 %v1015
        %v1054 = vunpack.c.h.b16 %v1015
        %v1055 = vunpack.c.l.b16 %v1016
        %v1056 = vunpack.c.h.b16 %v1016
        %v1057 = vunpack.c.l.b16 %v1017
        %v1058 = vunpack.c.h.b16 %v1017
        %v1059 = vunpack.c.l.b16 %v1018
        %v1060 = vunpack.c.h.b16 %v1018
        %v1061 = vunpack.c.l.b16 %v1019
        %v1062 = vunpack.c.h.b16 %v1019
        %v1063 = vunpack.c.l.b16 %v1020
        %v1064 = vunpack.c.h.b16 %v1020
        %v1065 = vunpack.c.l.b16 %v1021
        %v1066 = vunpack.c.h.b16 %v1021
        %v1067 = vunpack.c.l.b16 %v1022
        %v1068 = vunpack.c.h.b16 %v1022
        %v1069 = vunpack.c.l.b16 %v1023
        %v1070 = vunpack.c.h.b16 %v1023
        %v1071 = vunpack.c.l.b16 %v1024
        %v1072 = vunpack.c.h.b16 %v1024
        %v1073 = vunpack.c.l.b16 %v1025
        %v1074 = vunpack.c.h.b16 %v1025
        %v1075 = vunpack.c.l.b16 %v1026
        %v1076 = vunpack.c.h.b16 %v1026
        %v1077 = vunpack.c.l.b16 %v1027
        %v1078 = vunpack.c.h.b16 %v1027
        %v1079 = vunpack.c.l.b16 %v1028
        %v1080 = vunpack.c.h.b16 %v1028
        %v1081 = vpack.c.b16 %v1051, %v1049
        %v1082 = vpack.c.b16 %v1052, %v1050
        %v1083 = vpack.c.b16 %v1055, %v1053
        %v1084 = vpack.c.b16 %v1056, %v1054
        %v1085 = vpack.c.b16 %v1059, %v1057
        %v1086 = vpack.c.b16 %v1060, %v1058
        %v1087 = vpack.c.b16 %v1063, %v1061
        %v1088 = vpack.c.b16 %v1064, %v1062
        %v1089 = vpack.c.b16 %v1067, %v1065
        %v1090 = vpack.c.b16 %v1068, %v1066
        %v1091 = vpack.c.b16 %v1071, %v1069
        %v1092 = vpack.c.b16 %v1072, %v1070
        %v1093 = vpack.c.b16 %v1075, %v1073
        %v1094 = vpack.c.b16 %v1076, %v1074
        %v1095 = vpack.c.b16 %v1079, %v1077
        %v1096 = vpack.c.b16 %v1080, %v1078
        %1113 = vmatprep.subr.bf16.mxu0 %v1096
        %1114 = vmatpush1.bf16.msra.mxu0 %v1095
        %1115 = vmatprep.subr.bf16.mxu0 %v1094
        %1116 = vmatpush1.bf16.msra.mxu0 %v1093
        %1117 = vmatprep.subr.bf16.mxu0 %v1092
        %1118 = vmatpush1.bf16.msra.mxu0 %v1091
        %1119 = vmatprep.subr.bf16.mxu0 %v1090
        %1120 = vmatpush1.bf16.msra.mxu0 %v1089
        %1121 = vmatprep.subr.bf16.mxu0 %v1088
        %1122 = vmatpush1.bf16.msra.mxu0 %v1087
        %1123 = vmatprep.subr.bf16.mxu0 %v1086
        %1124 = vmatpush1.bf16.msra.mxu0 %v1085
        %1125 = vmatprep.subr.bf16.mxu0 %v1084
        %1126 = vmatpush1.bf16.msra.mxu0 %v1083
        %1127 = vmatprep.subr.bf16.mxu0 %v1082
        %1128 = vmatpush1.bf16.msra.mxu0 %v1081
        %1129 = vmatprep.subr.bf16.mxu0 0
        %1130 = vmatpush2.bf16.msra.mxu0 0
        %1131 = vmatprep.subr.bf16.mxu0 0
        %1132 = vmatpush2.bf16.msra.mxu0 0
        %1133 = vmatprep.subr.bf16.mxu0 0
        %1134 = vmatpush2.bf16.msra.mxu0 0
        %1135 = vmatprep.subr.bf16.mxu0 0
        %1136 = vmatpush2.bf16.msra.mxu0 0
        %1137 = vmatprep.subr.bf16.mxu0 0
        %1138 = vmatpush2.bf16.msra.mxu0 0
        %1139 = vmatprep.subr.bf16.mxu0 0
        %1140 = vmatpush2.bf16.msra.mxu0 0
        %1141 = vmatprep.subr.bf16.mxu0 0
        %1142 = vmatpush2.bf16.msra.mxu0 0
        %1143 = vmatprep.subr.bf16.mxu0 0
        %1144 = vmatpush2.bf16.msra.mxu0 0
        %1145 = vmatprep.mubr.bf16.mxu0 0
        %1146 = vmatmul.mubr.bf16.gmra.mxu0 %v1031
        %v1147 = vpop.f32.mrf.mxu0
        %v1148 = vadd.f32 0.0, %v1147
        %v1149 = vpop.f32.mrf.mxu0
        %v1150 = vadd.f32 0.0, %v1149
        %v1151 = vpop.f32.mrf.mxu0
        %v1152 = vadd.f32 0.0, %v1151
        %v1153 = vpop.f32.mrf.mxu0
        %v1154 = vadd.f32 0.0, %v1153
        %1155 = vdwg.mxu0
        %s1156 = sshra.s32 %s804, 1
        %s1157 = sand.u32 %s804, 1
        %s1158 = sshra.s32 %s804, 1
        %s1159 = sand.u32 %s804, 1
        %s1160 = smul.u32 %s1156, 2
        %s1161 = smul.u32 %s1160, 2
        %s1162 = sadd.s32 %s1161, %s1159
        %s1163 = scalar_lea.vmem %s334, %s1162 [#allocation8]
        %v1164 = vld [vmem:[%s1163] ss:$2 sm:$0x3]
        %s1165 = scalar_lea.vmem %s343, %s1162 [#allocation9]
        %v1166 = vld [vmem:[%s1165] ss:$2 sm:$0x3]
        %v1167 = vmul.f32 %v1166, %v1164
        %v1168 = vrot.slane %v398, 4
        %v1169 = vrot.slane %v399, 4
        %v1172 = vunpack.c.l.bf16 %v1168
        %v1173 = vunpack.c.l.bf16 %v1169
        %1174 = vadd.xlane.f32.xlu0 %v1172
        %v1175 = vpop.xlane.xlu0 %1174
        %1176 = vadd.xlane.f32.xlu0 %v1173
        %v1177 = vpop.xlane.xlu0 %1176
        %v1179 = vlaneseq
        %v1180 = vshrl.u32 %v1179, 7
        %v1181 = vsub.s32 0, %v1180
        %v1182 = vrot.slane %v1164, %v1181
        %v1183 = vlaneseq
        %v1184 = vshrl.u32 %v1183, 7
        %v1185 = vsub.s32 1, %v1184
        %v1186 = vrot.slane %v1164, %v1185
        %v1189 = vmul.f32 %v1148, %v1182
        %v1190 = vmul.f32 %v1150, %v1186
        %v1191 = vmul.f32 %v1152, %v1182
        %v1192 = vmul.f32 %v1154, %v1186
        %v1194 = vlaneseq
        %v1195 = vshrl.u32 %v1194, 7
        %v1196 = vsub.s32 0, %v1195
        %v1197 = vrot.slane %v1167, %v1196
        %v1198 = vlaneseq
        %v1199 = vshrl.u32 %v1198, 7
        %v1200 = vsub.s32 1, %v1199
        %v1201 = vrot.slane %v1167, %v1200
        %v1204 = vmul.f32 %v1175, %v1197
        %v1205 = vmul.f32 %v1175, %v1201
        %v1206 = vmul.f32 %v1177, %v1197
        %v1207 = vmul.f32 %v1177, %v1201
        %v1208 = vsub.f32 %v1189, %v1204
        %v1209 = vsub.f32 %v1190, %v1205
        %v1210 = vsub.f32 %v1191, %v1206
        %v1211 = vsub.f32 %v1192, %v1207
        %v1212 = vadd.f32 %v800, %v1208
        %v1213 = vadd.f32 %v801, %v1209
        %v1214 = vadd.f32 %v802, %v1210
        %v1215 = vadd.f32 %v803, %v1211
        %p1216 = scmp.eq.s32.totalorder %s33, 0
        // Predicated region
        $region57: #{tpu_custom_call.1} parent=39 // pred_check
          %p1217 = pneg %p1216
        $region58: #{tpu_custom_call.1} parent=39 // pred_check_branch
          %1219 = sbr.rel (%p1217) target = $region60
        $region59: #{tpu_custom_call.1} parent=39 // pred_region
          %1220 = vst [vmem:[%s383] sm:$0xff] %v1212
          %1221 = vst [vmem:[%s383 + $0x8] sm:$0xff] %v1213
          %1222 = vst [vmem:[%s383 + $0x10] sm:$0xff] %v1214
          %1223 = vst [vmem:[%s383 + $0x18] sm:$0xff] %v1215
        $region60: #{tpu_custom_call.1} parent=39 // pred_fallthru
          _
        %p1224 = scmp.ne.s32.totalorder %s33, 0
        // Predicated region
        $region61: #{tpu_custom_call.1} parent=39 // pred_check
          %p1225 = pneg %p1224
        $region62: #{tpu_custom_call.1} parent=39 // pred_check_branch
          %1227 = sbr.rel (%p1225) target = $region64
        $region63: #{tpu_custom_call.1} parent=39 // pred_region
          %v1228 = vld [vmem:[%s383] sm:$0xff]
          %v1229 = vld [vmem:[%s383 + $0x8] sm:$0xff]
          %v1230 = vld [vmem:[%s383 + $0x10] sm:$0xff]
          %v1231 = vld [vmem:[%s383 + $0x18] sm:$0xff]
          %v1232 = vadd.f32 %v1228, %v1212
          %v1233 = vadd.f32 %v1229, %v1213
          %v1234 = vadd.f32 %v1230, %v1214
          %v1235 = vadd.f32 %v1231, %v1215
          %1236 = vst [vmem:[%s383] sm:$0xff] %v1232
          %1237 = vst [vmem:[%s383 + $0x8] sm:$0xff] %v1233
          %1238 = vst [vmem:[%s383 + $0x10] sm:$0xff] %v1234
          %1239 = vst [vmem:[%s383 + $0x18] sm:$0xff] %v1235
        $region64: #{tpu_custom_call.1} parent=39 // pred_fallthru
          _
        // Predicated region
        $region65: #{tpu_custom_call.1} parent=39 // pred_check
          %p1240 = pneg %p1216
        $region66: #{tpu_custom_call.1} parent=39 // pred_check_branch
          %1242 = sbr.rel (%p1240) target = $region68
        $region67: #{tpu_custom_call.1} parent=39 // pred_region
          %v1243 = vld [vmem:[%s383] sm:$0xff]
          %v1244 = vld [vmem:[%s383 + $0x8] sm:$0xff]
          %v1245 = vld [vmem:[%s383 + $0x10] sm:$0xff]
          %v1246 = vld [vmem:[%s383 + $0x18] sm:$0xff]
          %v1247 = vld [vmem:[%s393] sm:$0x3]
          %v1249 = vlaneseq
          %v1250 = vshrl.u32 %v1249, 7
          %v1251 = vsub.s32 0, %v1250
          %v1252 = vrot.slane %v1247, %v1251
          %v1253 = vlaneseq
          %v1254 = vshrl.u32 %v1253, 7
          %v1255 = vsub.s32 1, %v1254
          %v1256 = vrot.slane %v1247, %v1255
          %v1259 = vadd.f32 %v1243, %v1252
          %v1260 = vadd.f32 %v1244, %v1256
          %v1261 = vadd.f32 %v1245, %v1252
          %v1262 = vadd.f32 %v1246, %v1256
          %1263 = vst [vmem:[%s383] sm:$0xff] %v1259
          %1264 = vst [vmem:[%s383 + $0x8] sm:$0xff] %v1260
          %1265 = vst [vmem:[%s383 + $0x10] sm:$0xff] %v1261
          %1266 = vst [vmem:[%s383 + $0x18] sm:$0xff] %v1262
        $region68: #{tpu_custom_call.1} parent=39 // pred_fallthru
          _
        %s1267 = sand.u32 %s189, 1
        %s1268 = scalar_lea.sflag [#allocation5], %s1267
        %s1269 = sand.u32 %s189, 1
        %s1270 = smul.addr %s1269, 32
        %s1271 = scalar_lea.vmem [#allocation11], %s1270
        // Predicated region
        $region69: #{tpu_custom_call.1} parent=39 // pred_check
          %p1272 = pneg %p199
        $region70: #{tpu_custom_call.1} parent=39 // pred_check_branch
          %1274 = sbr.rel (%p1272) target = $region72
        $region71: #{tpu_custom_call.1} parent=39 // pred_region
          %s1275 = smul.u32 2, %s31
          %s1276 = smul.u32 2, %s32
          %s1278 = ssub.s32 512, 512
          %1279 = vsyncadd %s1268, %s1278
          %s1280 = smul.addr %s1275, 4
          %s1281 = sadd.s32 %s1276, %s1280
          %s1282 = smul.addr %s1281, 128
          %s1283 = scalar_lea.hbm %s5, %s1282
          %s1284 = sshll.u32 %s1271, 4
          %s1285 = int_to_ptr.vmem [resolvable:$true] %s1284
          %1290 = dma.vmem_to_hbm [thread:$0]  %s1285, 512, %s1283, %s1268, 256, 512, 16
        $region72: #{tpu_custom_call.1} parent=39 // pred_fallthru
          _
      $region40: #{tpu_custom_call.1} parent=5 // pred_fallthru
        _
      %p1291 = scmp.le.s32.totalorder 2, %s21
      // Predicated region
      $region73: #{tpu_custom_call.1} parent=5 // pred_check
        %p1292 = pneg %p1291
      $region74: #{tpu_custom_call.1} parent=5 // pred_check_branch
        %1294 = sbr.rel (%p1292) target = $region76
      $region75: #{tpu_custom_call.1} parent=5 // pred_region
        %s1295 = ssub.s32 %s21, 2
        // Predicated region
        $region77: #{tpu_custom_call.1} parent=75 // pred_check
          %p1296 = pneg %p205
        $region78: #{tpu_custom_call.1} parent=75 // pred_check_branch
          %1298 = sbr.rel (%p1296) target = $region80
        $region79: #{tpu_custom_call.1} parent=75 // pred_region
          %s1299 = sand.u32 %s190, 1
          %s1300 = scalar_lea.sflag [#allocation5], %s1299
          %s1301 = sand.u32 %s190, 1
          %s1302 = smul.addr %s1301, 32
          %s1303 = scalar_lea.vmem [#allocation11], %s1302
          %1304 = dma.done %s1300, 512
        $region80: #{tpu_custom_call.1} parent=75 // pred_fallthru
          _
      $region76: #{tpu_custom_call.1} parent=5 // pred_fallthru
        _
    $region6: #{tpu_custom_call.1} parent=1 // loop_footer
      %s25 = sadd.s32 1, %s21
    $region7: #{tpu_custom_call.1} parent=1 // loop_footer_branch
      %20 = sbr.rel target = $region3
    $region8: #{tpu_custom_call.1} parent=1 // loop_exit
      _
    %1305 = vsyncpa [#allocation4], 1
    %s1306 = scalar_lea.sflag [#allocation4], 1
    %1307 = vsyncpa %s1306, 1
    %1308 = vsyncpa [#allocation7], 1
    %s1309 = scalar_lea.sflag [#allocation7], 1
    %1310 = vsyncpa %s1309, 1
    %1311 = vsyncpa [#allocation10], 1
    %s1312 = scalar_lea.sflag [#allocation10], 1
    %1313 = vsyncpa %s1312, 1
    %1314 = vsyncpa [#allocation5], 1
    %s1315 = scalar_lea.sflag [#allocation5], 1
    %1316 = vsyncpa %s1315, 1

</llo_original>
